<compile_context>
chip_gen: v5e
topology: v5e:2x2
jax: 0.10.0
libtpu: 0.0.40
codegen_flags: <defaults>
</compile_context>

<pallas_src>
import functools

import jax
import jax.numpy as jnp
import numpy as np
from jax.experimental import pallas as pl
from jax.experimental.pallas import tpu as pltpu


def _largest_divisor(n: int, cap: int) -> int:
    """Largest divisor of n that is <= cap (at least 1)."""
    cap = max(1, min(n, cap))
    for d in range(cap, 0, -1):
        if n % d == 0:
            return d
    return 1


def _largest_aligned_divisor(n: int, cap: int, align: int = 128) -> int:
    """Largest multiple of `align` that divides n and is <= cap (>= align)."""
    best = align
    d = align
    stop = min(n, max(cap, align))
    while d <= stop:
        if n % d == 0:
            best = d
        d += align
    return best


def _vn_max_pool_kernel(x_ref, w_ref, o_ref, max_ref, vec_ref, *, bb, nt):
    """One grid step = one (bb, C, 3, nt) slab of x.

    x_ref  : (bb, C, 3, nt)   input block (batch slab x N-chunk)
    w_ref  : (C_dir, C)       map_to_dir weight (resident across the grid)
    o_ref  : (bb, C, 3)       output block (accumulator; stored on last chunk)
    max_ref: (bb, C, 1) f32   running max of <x, d> per (batch, channel)
    vec_ref: (bb, C, 3) f32   current winning 3-vector per (batch, channel)
    """
    j = pl.program_id(1)

    # Initialize the online-argmax state on the first N-chunk of each slab.
    @pl.when(j == 0)
    def _():
        max_ref[...] = jnp.full_like(max_ref, -jnp.inf)
        vec_ref[...] = jnp.zeros_like(vec_ref)

    w = w_ref[...]
    # Lane index inside this chunk: a (1, nt) int32 iota that broadcasts over
    # channels (avoids materializing a redundant (C, nt) index plane).
    pos = jax.lax.broadcasted_iota(jnp.int32, (1, nt), 1)

    for i in range(bb):   # static unroll over the small batch slab
        # Per-component (C, nt) planes — static slices of the 3-axis.
        xk = [x_ref[i, :, k, :] for k in range(3)]

        # Direction features d = W @ x: one wide-(nt)-RHS MXU dot per
        # component against the resident W (no reshape / concat copies).
        dk = [jnp.dot(w, xk[k], preferred_element_type=jnp.float32)
              for k in range(3)]

        # <x, d> over the 3-vector axis, in f32 (broadcasts over channels when
        # C_dir == 1, i.e. share_nonlinearity=True).
        dp = xk[0] * dk[0] + xk[1] * dk[1] + xk[2] * dk[2]        # (C, nt) f32

        # Chunk-local FIRST-occurrence argmax via max + first-index min
        # (torch.max tie behavior), using only lane reductions.
        m = jnp.max(dp, axis=-1, keepdims=True)                    # (C, 1)
        first = jnp.min(jnp.where(dp == m, pos, jnp.int32(nt)),
                        axis=-1, keepdims=True)                    # (C, 1) i32
        oh = pos == first                                          # (C, nt)

        # Winning 3-vector of this chunk via one-hot masked sums, assembled
        # into a single (C, 3) value (one store instead of 3 column writes).
        v = jnp.concatenate(
            [jnp.sum(jnp.where(oh, xk[k].astype(jnp.float32), 0.0),
                     axis=-1, keepdims=True)
             for k in range(3)], axis=-1)                          # (C, 3) f32

        # Online update; strict '>' keeps the earliest chunk on exact ties,
        # preserving global first-occurrence argmax semantics.
        prev = max_ref[i]
        take = m > prev
        max_ref[i] = jnp.where(take, m, prev)
        vec_ref[i] = jnp.where(take, v, vec_ref[i])

    # Single combined (bb, C, 3) output store on the last chunk.
    @pl.when(j == pl.num_programs(1) - 1)
    def _():
        o_ref[...] = vec_ref[...].astype(o_ref.dtype)


def vn_max_pool(x, w, *, block_b=None, block_n=None,
                target_block_bytes=2 << 20, vmem_limit_bytes=32 << 20):
    """Vector-neuron max pool.

    x: [B, C, 3, N]  point features (native PyTorch layout — no host copy).
    w: [C_dir, C]    map_to_dir Linear weight (no bias); C_dir == C, or 1 when
                     share_nonlinearity=True.  Pass x and w as bf16 to halve
                     HBM traffic; the dot/argmax math stays in f32.
    Returns [B, C, 3] in x.dtype.
    """
    B, C, three, N = x.shape
    assert three == 3, "x must be [B, C, 3, N]"
    C_dir, C_in = w.shape
    assert C_in == C and C_dir in (1, C)

    itemsize = jnp.dtype(x.dtype).itemsize
    per_batch_bytes = C * 3 * N * itemsize

    # --- N-chunk size --------------------------------------------------------
    if block_n is not None:
        nt = int(block_n)
        assert N % nt == 0 and (nt == N or nt % 128 == 0)
    elif per_batch_bytes <= target_block_bytes or N % 128 != 0:
        nt = N                       # whole point cloud per step
    else:
        # Large N: tile it so the double-buffered x block (+ f32 temporaries)
        # fits the v7x / v5e VMEM budget; the in-kernel online argmax keeps
        # correctness across chunks while DMAs stay long and lane-dense.
        nt = _largest_aligned_divisor(N, target_block_bytes // (C * 3 * itemsize))

    # --- batch slab size -----------------------------------------------------
    chunk_bytes = C * 3 * nt * itemsize
    if block_b is not None:
        bb = int(block_b)
        assert B % bb == 0
    else:
        bb_cap = max(1, target_block_bytes // chunk_bytes)
        bb_cap = min(bb_cap, 32)               # bound the static unroll
        bb_cap = min(bb_cap, max(1, B // 2))   # keep >= 2 parallel steps (v7x)
        bb = _largest_divisor(B, bb_cap)

    grid = (B // bb, N // nt)

    kernel = functools.partial(_vn_max_pool_kernel, bb=bb, nt=nt)
    return pl.pallas_call(
        kernel,
        out_shape=jax.ShapeDtypeStruct((B, C, 3), x.dtype),
        grid=grid,
        in_specs=[
            pl.BlockSpec((bb, C, 3, nt), lambda i, j: (i, 0, 0, j)),
            pl.BlockSpec((C_dir, C), lambda i, j: (0, 0)),
        ],
        out_specs=pl.BlockSpec((bb, C, 3), lambda i, j: (i, 0, 0)),
        scratch_shapes=[
            pltpu.VMEM((bb, C, 1), jnp.float32),
            pltpu.VMEM((bb, C, 3), jnp.float32),
        ],
        compiler_params=pltpu.CompilerParams(
            dimension_semantics=("parallel", "arbitrary"),
            vmem_limit_bytes=vmem_limit_bytes),
    )(x, w)


def ref_forward(x, w):
    """Pure-JAX reference mirroring the PyTorch module exactly."""
    d = jnp.einsum("oc,bckn->bokn", w, x)
    dot = jnp.sum(x * d, axis=2)                       # [B, C, N]
    idx = jnp.argmax(dot, axis=-1)                     # [B, C] (first max)
    return jnp.take_along_axis(x, idx[:, :, None, None], axis=-1)[..., 0]


if __name__ == "__main__":
    key = jax.random.PRNGKey(0)
    kx, kw, kw1 = jax.random.split(key, 3)

    # Small, hardware-aligned demo shapes: C % 8 == 0 (sublanes), N % 128 == 0.
    B, C, N = 4, 16, 512
    x = jax.random.normal(kx, (B, C, 3, N), jnp.float32)
    w = 0.5 * jax.random.normal(kw, (C, C), jnp.float32)     # share_nonlinearity=False
    w1 = 0.5 * jax.random.normal(kw1, (1, C), jnp.float32)   # share_nonlinearity=True

    ref = ref_forward(x, w)

    # 1) Default tiling: batch-slab blocking (bb = 2 here), whole N per step.
    out = jax.block_until_ready(vn_max_pool(x, w))
    assert out.shape == (B, C, 3)
    np.testing.assert_allclose(np.asarray(out), np.asarray(ref),
                               rtol=1e-5, atol=1e-5)

    # 2) Forced N-tiling: exercises the online-argmax reduction path used for
    #    very large point clouds (v7x VMEM budget).
    out_chunked = jax.block_until_ready(vn_max_pool(x, w, block_b=1, block_n=128))
    np.testing.assert_allclose(np.asarray(out_chunked), np.asarray(ref),
                               rtol=1e-5, atol=1e-5)

    # 3) share_nonlinearity=True (map_to_dir: C -> 1, direction shared).
    out_shared = jax.block_until_ready(vn_max_pool(x, w1))
    np.testing.assert_allclose(np.asarray(out_shared),
                               np.asarray(ref_forward(x, w1)),
                               rtol=1e-5, atol=1e-5)

    # 4) bf16 I/O smoke test (halves HBM bytes on this HBM-bound op; argmax is
    #    tie-sensitive under reduced precision, so only sanity-check it).
    out_bf16 = jax.block_until_ready(
        vn_max_pool(x.astype(jnp.bfloat16), w.astype(jnp.bfloat16)))
    assert out_bf16.shape == (B, C, 3) and out_bf16.dtype == jnp.bfloat16
    assert bool(jnp.all(jnp.isfinite(out_bf16.astype(jnp.float32))))

    print("KERNEL_OK")
</pallas_src>

<mosaic_0001>
module attributes {stable_mosaic.version = 11 : i64} {
  func.func @_vn_max_pool_kernel(%arg0: i32, %arg1: i32, %arg2: memref<2x16x3x512xf32, #tpu.memory_space<vmem>>, %arg3: memref<16x16xf32, #tpu.memory_space<vmem>>, %arg4: memref<2x16x3xf32, #tpu.memory_space<vmem>>, %arg5: memref<2x16x1xf32, #tpu.memory_space<vmem>>, %arg6: memref<2x16x3xf32, #tpu.memory_space<vmem>>) attributes {dimension_semantics = [#tpu.dimension_semantics<parallel>, #tpu.dimension_semantics<arbitrary>], iteration_bounds = array<i64: 2, 1>, scalar_prefetch = 0 : i64, scratch_operands = 2 : i64, tpu.core_type = #tpu.core_type<tc>, window_params = [{transform_indices = @transform_0, window_bounds = array<i64: 2, 16, 3, 512>}, {pipeline_mode = #tpu.pipeline_mode<synchronous>, transform_indices = @transform_1, window_bounds = array<i64: 16, 16>}, {transform_indices = @transform_2, window_bounds = array<i64: 2, 16, 3>}]} {
    %c0_i32 = arith.constant 0 : i32
    %0 = arith.cmpi eq, %arg1, %c0_i32 : i32
    %1 = arith.extui %0 : i1 to i32
    %c0_i32_0 = arith.constant 0 : i32
    %2 = arith.cmpi ne, %1, %c0_i32_0 : i32
    scf.if %2 {
      %cst_72 = arith.constant 0xFF800000 : f32
      %118 = vector.broadcast %cst_72 : f32 to vector<2x16x1xf32>
      %c0_73 = arith.constant 0 : index
      %c0_74 = arith.constant 0 : index
      %c0_75 = arith.constant 0 : index
      %119 = vector.load %arg5[%c0_73, %c0_74, %c0_75] : memref<2x16x1xf32, #tpu.memory_space<vmem>>, vector<2x16x1xf32>
      tpu.vector_store %arg5[%c0_73, %c0_74, %c0_75], %118 {strides = array<i32>} : memref<2x16x1xf32, #tpu.memory_space<vmem>>, vector<2x16x1xf32>,
      %cst_76 = arith.constant 0.000000e+00 : f32
      %120 = vector.broadcast %cst_76 : f32 to vector<2x16x3xf32>
      %c0_77 = arith.constant 0 : index
      %c0_78 = arith.constant 0 : index
      %c0_79 = arith.constant 0 : index
      %121 = vector.load %arg6[%c0_77, %c0_78, %c0_79] : memref<2x16x3xf32, #tpu.memory_space<vmem>>, vector<2x16x3xf32>
      tpu.vector_store %arg6[%c0_77, %c0_78, %c0_79], %120 {strides = array<i32>} : memref<2x16x3xf32, #tpu.memory_space<vmem>>, vector<2x16x3xf32>,
    } else {
    }
    %c0 = arith.constant 0 : index
    %c0_1 = arith.constant 0 : index
    %3 = vector.load %arg3[%c0, %c0_1] : memref<16x16xf32, #tpu.memory_space<vmem>>, vector<16x16xf32>
    %4 = tpu.iota {dimensions = array<i32: 1>} : vector<1x512xi32>
    %c0_2 = arith.constant 0 : index
    %c0_3 = arith.constant 0 : index
    %c0_4 = arith.constant 0 : index
    %c0_5 = arith.constant 0 : index
    %5 = vector.load %arg2[%c0_2, %c0_3, %c0_4, %c0_5] : memref<2x16x3x512xf32, #tpu.memory_space<vmem>>, vector<1x16x1x512xf32>
    %6 = vector.shape_cast %5 : vector<1x16x1x512xf32> to vector<16x512xf32>
    %c0_6 = arith.constant 0 : index
    %c0_7 = arith.constant 0 : index
    %c1 = arith.constant 1 : index
    %c0_8 = arith.constant 0 : index
    %7 = vector.load %arg2[%c0_6, %c0_7, %c1, %c0_8] : memref<2x16x3x512xf32, #tpu.memory_space<vmem>>, vector<1x16x1x512xf32>
    %8 = vector.shape_cast %7 : vector<1x16x1x512xf32> to vector<16x512xf32>
    %c0_9 = arith.constant 0 : index
    %c0_10 = arith.constant 0 : index
    %c2 = arith.constant 2 : index
    %c0_11 = arith.constant 0 : index
    %9 = vector.load %arg2[%c0_9, %c0_10, %c2, %c0_11] : memref<2x16x3x512xf32, #tpu.memory_space<vmem>>, vector<1x16x1x512xf32>
    %10 = vector.shape_cast %9 : vector<1x16x1x512xf32> to vector<16x512xf32>
    %cst = arith.constant dense<0.000000e+00> : vector<16x512xf32>
    %11 = tpu.matmul %3, %6, %cst {dimension_numbers = #tpu.dot_dimension_numbers<[1], [0], [0], [1], [0, 0, 1, 1], [], []>} : vector<16x16xf32>, vector<16x512xf32>, vector<16x512xf32> -> vector<16x512xf32>
    %cst_12 = arith.constant dense<0.000000e+00> : vector<16x512xf32>
    %12 = tpu.matmul %3, %8, %cst_12 {dimension_numbers = #tpu.dot_dimension_numbers<[1], [0], [0], [1], [0, 0, 1, 1], [], []>} : vector<16x16xf32>, vector<16x512xf32>, vector<16x512xf32> -> vector<16x512xf32>
    %cst_13 = arith.constant dense<0.000000e+00> : vector<16x512xf32>
    %13 = tpu.matmul %3, %10, %cst_13 {dimension_numbers = #tpu.dot_dimension_numbers<[1], [0], [0], [1], [0, 0, 1, 1], [], []>} : vector<16x16xf32>, vector<16x512xf32>, vector<16x512xf32> -> vector<16x512xf32>
    %14 = arith.mulf %6, %11 : vector<16x512xf32>
    %15 = arith.mulf %8, %12 : vector<16x512xf32>
    %16 = arith.addf %14, %15 : vector<16x512xf32>
    %17 = arith.mulf %10, %13 : vector<16x512xf32>
    %18 = arith.addf %16, %17 : vector<16x512xf32>
    %cst_14 = arith.constant dense<0xFF800000> : vector<16xf32>
    %19 = vector.multi_reduction <maximumf>, %18, %cst_14 [1] : vector<16x512xf32> to vector<16xf32>
    %20 = vector.shape_cast %19 : vector<16xf32> to vector<16x1xf32>
    %21 = vector.broadcast %20 : vector<16x1xf32> to vector<16x512xf32>
    %22 = arith.cmpf oeq, %18, %21 : vector<16x512xf32>
    %c512_i32 = arith.constant 512 : i32
    %23 = vector.shape_cast %4 : vector<1x512xi32> to vector<1x512xi32>
    %24 = vector.broadcast %23 : vector<1x512xi32> to vector<16x512xi32>
    %25 = vector.broadcast %c512_i32 : i32 to vector<16x512xi32>
    %26 = arith.select %22, %24, %25 : vector<16x512xi1>, vector<16x512xi32>
    %cst_15 = arith.constant dense<2147483647> : vector<16xi32>
    %27 = vector.multi_reduction <minsi>, %26, %cst_15 [1] : vector<16x512xi32> to vector<16xi32>
    %28 = vector.shape_cast %27 : vector<16xi32> to vector<16x1xi32>
    %29 = vector.broadcast %4 : vector<1x512xi32> to vector<16x512xi32>
    %30 = vector.broadcast %28 : vector<16x1xi32> to vector<16x512xi32>
    %31 = arith.cmpi eq, %29, %30 : vector<16x512xi32>
    %cst_16 = arith.constant 0.000000e+00 : f32
    %32 = vector.broadcast %cst_16 : f32 to vector<16x512xf32>
    %33 = arith.select %31, %6, %32 : vector<16x512xi1>, vector<16x512xf32>
    %cst_17 = arith.constant dense<0.000000e+00> : vector<16xf32>
    %34 = vector.multi_reduction <add>, %33, %cst_17 [1] : vector<16x512xf32> to vector<16xf32>
    %35 = vector.shape_cast %34 : vector<16xf32> to vector<16x1xf32>
    %cst_18 = arith.constant 0.000000e+00 : f32
    %36 = vector.broadcast %cst_18 : f32 to vector<16x512xf32>
    %37 = arith.select %31, %8, %36 : vector<16x512xi1>, vector<16x512xf32>
    %cst_19 = arith.constant dense<0.000000e+00> : vector<16xf32>
    %38 = vector.multi_reduction <add>, %37, %cst_19 [1] : vector<16x512xf32> to vector<16xf32>
    %39 = vector.shape_cast %38 : vector<16xf32> to vector<16x1xf32>
    %cst_20 = arith.constant 0.000000e+00 : f32
    %40 = vector.broadcast %cst_20 : f32 to vector<16x512xf32>
    %41 = arith.select %31, %10, %40 : vector<16x512xi1>, vector<16x512xf32>
    %cst_21 = arith.constant dense<0.000000e+00> : vector<16xf32>
    %42 = vector.multi_reduction <add>, %41, %cst_21 [1] : vector<16x512xf32> to vector<16xf32>
    %43 = vector.shape_cast %42 : vector<16xf32> to vector<16x1xf32>
    %44 = tpu.concatenate %35, %39, %43 in 1 : vector<16x1xf32>, vector<16x1xf32>, vector<16x1xf32> -> vector<16x3xf32>
    %c0_22 = arith.constant 0 : index
    %c0_23 = arith.constant 0 : index
    %c0_24 = arith.constant 0 : index
    %45 = vector.load %arg5[%c0_22, %c0_23, %c0_24] : memref<2x16x1xf32, #tpu.memory_space<vmem>>, vector<1x16x1xf32>
    %46 = vector.shape_cast %45 : vector<1x16x1xf32> to vector<16x1xf32>
    %47 = arith.cmpf ogt, %20, %46 : vector<16x1xf32>
    %48 = arith.select %47, %20, %46 : vector<16x1xi1>, vector<16x1xf32>
    %c0_25 = arith.constant 0 : index
    %c0_26 = arith.constant 0 : index
    %c0_27 = arith.constant 0 : index
    %49 = vector.load %arg5[%c0_25, %c0_26, %c0_27] : memref<2x16x1xf32, #tpu.memory_space<vmem>>, vector<1x16x1xf32>
    %50 = vector.shape_cast %49 : vector<1x16x1xf32> to vector<16x1xf32>
    %51 = vector.shape_cast %48 : vector<16x1xf32> to vector<1x16x1xf32>
    tpu.vector_store %arg5[%c0_25, %c0_26, %c0_27], %51 {strides = array<i32>} : memref<2x16x1xf32, #tpu.memory_space<vmem>>, vector<1x16x1xf32>,
    %c0_28 = arith.constant 0 : index
    %c0_29 = arith.constant 0 : index
    %c0_30 = arith.constant 0 : index
    %52 = vector.load %arg6[%c0_28, %c0_29, %c0_30] : memref<2x16x3xf32, #tpu.memory_space<vmem>>, vector<1x16x3xf32>
    %53 = vector.shape_cast %52 : vector<1x16x3xf32> to vector<16x3xf32>
    %54 = vector.shape_cast %47 : vector<16x1xi1> to vector<16x1xi1>
    %55 = vector.broadcast %54 : vector<16x1xi1> to vector<16x3xi1>
    %56 = arith.select %55, %44, %53 : vector<16x3xi1>, vector<16x3xf32>
    %c0_31 = arith.constant 0 : index
    %c0_32 = arith.constant 0 : index
    %c0_33 = arith.constant 0 : index
    %57 = vector.load %arg6[%c0_31, %c0_32, %c0_33] : memref<2x16x3xf32, #tpu.memory_space<vmem>>, vector<1x16x3xf32>
    %58 = vector.shape_cast %57 : vector<1x16x3xf32> to vector<16x3xf32>
    %59 = vector.shape_cast %56 : vector<16x3xf32> to vector<1x16x3xf32>
    tpu.vector_store %arg6[%c0_31, %c0_32, %c0_33], %59 {strides = array<i32>} : memref<2x16x3xf32, #tpu.memory_space<vmem>>, vector<1x16x3xf32>,
    %c1_34 = arith.constant 1 : index
    %c0_35 = arith.constant 0 : index
    %c0_36 = arith.constant 0 : index
    %c0_37 = arith.constant 0 : index
    %60 = vector.load %arg2[%c1_34, %c0_35, %c0_36, %c0_37] : memref<2x16x3x512xf32, #tpu.memory_space<vmem>>, vector<1x16x1x512xf32>
    %61 = vector.shape_cast %60 : vector<1x16x1x512xf32> to vector<16x512xf32>
    %c1_38 = arith.constant 1 : index
    %c0_39 = arith.constant 0 : index
    %c1_40 = arith.constant 1 : index
    %c0_41 = arith.constant 0 : index
    %62 = vector.load %arg2[%c1_38, %c0_39, %c1_40, %c0_41] : memref<2x16x3x512xf32, #tpu.memory_space<vmem>>, vector<1x16x1x512xf32>
    %63 = vector.shape_cast %62 : vector<1x16x1x512xf32> to vector<16x512xf32>
    %c1_42 = arith.constant 1 : index
    %c0_43 = arith.constant 0 : index
    %c2_44 = arith.constant 2 : index
    %c0_45 = arith.constant 0 : index
    %64 = vector.load %arg2[%c1_42, %c0_43, %c2_44, %c0_45] : memref<2x16x3x512xf32, #tpu.memory_space<vmem>>, vector<1x16x1x512xf32>
    %65 = vector.shape_cast %64 : vector<1x16x1x512xf32> to vector<16x512xf32>
    %cst_46 = arith.constant dense<0.000000e+00> : vector<16x512xf32>
    %66 = tpu.matmul %3, %61, %cst_46 {dimension_numbers = #tpu.dot_dimension_numbers<[1], [0], [0], [1], [0, 0, 1, 1], [], []>} : vector<16x16xf32>, vector<16x512xf32>, vector<16x512xf32> -> vector<16x512xf32>
    %cst_47 = arith.constant dense<0.000000e+00> : vector<16x512xf32>
    %67 = tpu.matmul %3, %63, %cst_47 {dimension_numbers = #tpu.dot_dimension_numbers<[1], [0], [0], [1], [0, 0, 1, 1], [], []>} : vector<16x16xf32>, vector<16x512xf32>, vector<16x512xf32> -> vector<16x512xf32>
    %cst_48 = arith.constant dense<0.000000e+00> : vector<16x512xf32>
    %68 = tpu.matmul %3, %65, %cst_48 {dimension_numbers = #tpu.dot_dimension_numbers<[1], [0], [0], [1], [0, 0, 1, 1], [], []>} : vector<16x16xf32>, vector<16x512xf32>, vector<16x512xf32> -> vector<16x512xf32>
    %69 = arith.mulf %61, %66 : vector<16x512xf32>
    %70 = arith.mulf %63, %67 : vector<16x512xf32>
    %71 = arith.addf %69, %70 : vector<16x512xf32>
    %72 = arith.mulf %65, %68 : vector<16x512xf32>
    %73 = arith.addf %71, %72 : vector<16x512xf32>
    %cst_49 = arith.constant dense<0xFF800000> : vector<16xf32>
    %74 = vector.multi_reduction <maximumf>, %73, %cst_49 [1] : vector<16x512xf32> to vector<16xf32>
    %75 = vector.shape_cast %74 : vector<16xf32> to vector<16x1xf32>
    %76 = vector.broadcast %75 : vector<16x1xf32> to vector<16x512xf32>
    %77 = arith.cmpf oeq, %73, %76 : vector<16x512xf32>
    %c512_i32_50 = arith.constant 512 : i32
    %78 = vector.shape_cast %4 : vector<1x512xi32> to vector<1x512xi32>
    %79 = vector.broadcast %78 : vector<1x512xi32> to vector<16x512xi32>
    %80 = vector.broadcast %c512_i32_50 : i32 to vector<16x512xi32>
    %81 = arith.select %77, %79, %80 : vector<16x512xi1>, vector<16x512xi32>
    %cst_51 = arith.constant dense<2147483647> : vector<16xi32>
    %82 = vector.multi_reduction <minsi>, %81, %cst_51 [1] : vector<16x512xi32> to vector<16xi32>
    %83 = vector.shape_cast %82 : vector<16xi32> to vector<16x1xi32>
    %84 = vector.broadcast %4 : vector<1x512xi32> to vector<16x512xi32>
    %85 = vector.broadcast %83 : vector<16x1xi32> to vector<16x512xi32>
    %86 = arith.cmpi eq, %84, %85 : vector<16x512xi32>
    %cst_52 = arith.constant 0.000000e+00 : f32
    %87 = vector.broadcast %cst_52 : f32 to vector<16x512xf32>
    %88 = arith.select %86, %61, %87 : vector<16x512xi1>, vector<16x512xf32>
    %cst_53 = arith.constant dense<0.000000e+00> : vector<16xf32>
    %89 = vector.multi_reduction <add>, %88, %cst_53 [1] : vector<16x512xf32> to vector<16xf32>
    %90 = vector.shape_cast %89 : vector<16xf32> to vector<16x1xf32>
    %cst_54 = arith.constant 0.000000e+00 : f32
    %91 = vector.broadcast %cst_54 : f32 to vector<16x512xf32>
    %92 = arith.select %86, %63, %91 : vector<16x512xi1>, vector<16x512xf32>
    %cst_55 = arith.constant dense<0.000000e+00> : vector<16xf32>
    %93 = vector.multi_reduction <add>, %92, %cst_55 [1] : vector<16x512xf32> to vector<16xf32>
    %94 = vector.shape_cast %93 : vector<16xf32> to vector<16x1xf32>
    %cst_56 = arith.constant 0.000000e+00 : f32
    %95 = vector.broadcast %cst_56 : f32 to vector<16x512xf32>
    %96 = arith.select %86, %65, %95 : vector<16x512xi1>, vector<16x512xf32>
    %cst_57 = arith.constant dense<0.000000e+00> : vector<16xf32>
    %97 = vector.multi_reduction <add>, %96, %cst_57 [1] : vector<16x512xf32> to vector<16xf32>
    %98 = vector.shape_cast %97 : vector<16xf32> to vector<16x1xf32>
    %99 = tpu.concatenate %90, %94, %98 in 1 : vector<16x1xf32>, vector<16x1xf32>, vector<16x1xf32> -> vector<16x3xf32>
    %c1_58 = arith.constant 1 : index
    %c0_59 = arith.constant 0 : index
    %c0_60 = arith.constant 0 : index
    %100 = vector.load %arg5[%c1_58, %c0_59, %c0_60] : memref<2x16x1xf32, #tpu.memory_space<vmem>>, vector<1x16x1xf32>
    %101 = vector.shape_cast %100 : vector<1x16x1xf32> to vector<16x1xf32>
    %102 = arith.cmpf ogt, %75, %101 : vector<16x1xf32>
    %103 = arith.select %102, %75, %101 : vector<16x1xi1>, vector<16x1xf32>
    %c1_61 = arith.constant 1 : index
    %c0_62 = arith.constant 0 : index
    %c0_63 = arith.constant 0 : index
    %104 = vector.load %arg5[%c1_61, %c0_62, %c0_63] : memref<2x16x1xf32, #tpu.memory_space<vmem>>, vector<1x16x1xf32>
    %105 = vector.shape_cast %104 : vector<1x16x1xf32> to vector<16x1xf32>
    %106 = vector.shape_cast %103 : vector<16x1xf32> to vector<1x16x1xf32>
    tpu.vector_store %arg5[%c1_61, %c0_62, %c0_63], %106 {strides = array<i32>} : memref<2x16x1xf32, #tpu.memory_space<vmem>>, vector<1x16x1xf32>,
    %c1_64 = arith.constant 1 : index
    %c0_65 = arith.constant 0 : index
    %c0_66 = arith.constant 0 : index
    %107 = vector.load %arg6[%c1_64, %c0_65, %c0_66] : memref<2x16x3xf32, #tpu.memory_space<vmem>>, vector<1x16x3xf32>
    %108 = vector.shape_cast %107 : vector<1x16x3xf32> to vector<16x3xf32>
    %109 = vector.shape_cast %102 : vector<16x1xi1> to vector<16x1xi1>
    %110 = vector.broadcast %109 : vector<16x1xi1> to vector<16x3xi1>
    %111 = arith.select %110, %99, %108 : vector<16x3xi1>, vector<16x3xf32>
    %c1_67 = arith.constant 1 : index
    %c0_68 = arith.constant 0 : index
    %c0_69 = arith.constant 0 : index
    %112 = vector.load %arg6[%c1_67, %c0_68, %c0_69] : memref<2x16x3xf32, #tpu.memory_space<vmem>>, vector<1x16x3xf32>
    %113 = vector.shape_cast %112 : vector<1x16x3xf32> to vector<16x3xf32>
    %114 = vector.shape_cast %111 : vector<16x3xf32> to vector<1x16x3xf32>
    tpu.vector_store %arg6[%c1_67, %c0_68, %c0_69], %114 {strides = array<i32>} : memref<2x16x3xf32, #tpu.memory_space<vmem>>, vector<1x16x3xf32>,
    %c0_i32_70 = arith.constant 0 : i32
    %115 = arith.cmpi eq, %arg1, %c0_i32_70 : i32
    %116 = arith.extui %115 : i1 to i32
    %c0_i32_71 = arith.constant 0 : i32
    %117 = arith.cmpi ne, %116, %c0_i32_71 : i32
    scf.if %117 {
      %c0_72 = arith.constant 0 : index
      %c0_73 = arith.constant 0 : index
      %c0_74 = arith.constant 0 : index
      %118 = vector.load %arg6[%c0_72, %c0_73, %c0_74] : memref<2x16x3xf32, #tpu.memory_space<vmem>>, vector<2x16x3xf32>
      %c0_75 = arith.constant 0 : index
      %c0_76 = arith.constant 0 : index
      %c0_77 = arith.constant 0 : index
      %119 = vector.load %arg4[%c0_75, %c0_76, %c0_77] : memref<2x16x3xf32, #tpu.memory_space<vmem>>, vector<2x16x3xf32>
      tpu.vector_store %arg4[%c0_75, %c0_76, %c0_77], %118 {strides = array<i32>} : memref<2x16x3xf32, #tpu.memory_space<vmem>>, vector<2x16x3xf32>,
    } else {
    }
    return
  }
  func.func @transform_0(%arg0: i32, %arg1: i32) -> (i32, i32, i32, i32) {
    %c0_i32 = arith.constant 0 : i32
    %c0_i32_0 = arith.constant 0 : i32
    %c0_i32_1 = arith.constant 0 : i32
    return %arg0, %c0_i32, %c0_i32_0, %arg1 : i32, i32, i32, i32
  }
  func.func @transform_1(%arg0: i32, %arg1: i32) -> (i32, i32) {
    %c0_i32 = arith.constant 0 : i32
    %c0_i32_0 = arith.constant 0 : i32
    %c0_i32_1 = arith.constant 0 : i32
    return %c0_i32, %c0_i32_0 : i32, i32
  }
  func.func @transform_2(%arg0: i32, %arg1: i32) -> (i32, i32, i32) {
    %c0_i32 = arith.constant 0 : i32
    %c0_i32_0 = arith.constant 0 : i32
    %c0_i32_1 = arith.constant 0 : i32
    return %arg0, %c0_i32, %c0_i32_0 : i32, i32, i32
  }
}

</mosaic_0001>

<llo_original>
// kernel: tpu_custom_call.1
$region0: #{tpu_custom_call.1}
  #allocation0 [shape = 'u32[]', space=smem, size = 0x4, offset = 0x4, fixed_abs, tag = 'smem constant byte address 0x4 - core index']
  #allocation1 [shape = 'u32[72,128]{1,0:T(1,128)}', space=vmem, size = 0x9000, scoped, tag = 'internal scratch']
  #allocation2 [shape = 'f32[2,16,1]{2,1,0:T(8,128)}', space=vmem, size = 0x4000, scoped, tag = 'scratch operand']
  #allocation3 [shape = 'f32[2,16,3]{2,1,0:T(8,128)}', space=vmem, size = 0x4000, scoped, tag = 'scratch operand']
  %s0 = inlined_call_operand.vmem [shape: f32[4,16,3,512], index: 0, kind: input, shape index: {}]
  %s1 = inlined_call_operand.vmem [shape: f32[16,16], index: 1, kind: input, shape index: {}]
  %s2 = inlined_call_operand.vmem [shape: f32[4,16,3], index: 2, kind: output, shape index: {}]
  %s3 = sld [smem:[#allocation0]]
  $region49: #{tpu_custom_call.1} parent=0
    _
  %s5 = ssub.s32 1, %s3
  %s6 = scalar_select 0, %s5, %s3
  loop: start=0, step=1, limit=4
  $region2: #{tpu_custom_call.1} parent=0 // loop_pre_header
    _
  $region3: #{tpu_custom_call.1} parent=0 // loop_header
    %s8 = sphi 0, %s12
    %p9 = scmp.ge.s32.totalorder %s8, 4
    %s15 = sphi 0, %s27
    %s16 = sphi 0, %s23
    %s17 = sphi 0, %s15
    %s18 = sphi 0, %s16
    %s19 = sphi 0, %s17
    %s20 = sphi 0, %s18
    %s32 = sphi 0, %s34
    %s35 = sphi 0, %s32
    %s36 = sphi 0, %s35
    %s52 = sphi 0, %s36
    %s56 = sphi 0, %s56
    %s58 = sphi 0, %s56
    %s59 = sphi 0, %s58
    %s73 = sphi 0, %s59
    %s79 = sphi 0, %s81
    %s82 = sphi 0, %s79
    %s83 = sphi 0, %s82
    %s99 = sphi 0, %s83
  $region4: #{tpu_custom_call.1} parent=0 // loop_header_branch
    %11 = sbr.rel (%p9) target = $region8
  $region5: #{tpu_custom_call.1} parent=0 // loop_body
    %s13 = ssub.s32 %s8, 1
    %s14 = ssub.s32 %s8, 2
    %s21 = sadd.s32 1, %s16
    %p22 = scmp.ge.s32.totalorder %s21, 1
    %s23 = scalar_select %p22, 0, %s21
    %s24 = sadd.s32 1, %s15
    %s25 = scalar_select %p22, %s24, %s15
    %p26 = scmp.ge.s32.totalorder %s25, 2
    %s27 = scalar_select %p26, 0, %s25
    %s28 = ssub.s32 %s15, %s27
    %s29 = ssub.s32 %s16, %s23
    %s30 = sor.u32 %s28, %s29
    %p31 = scmp.eq.s32.totalorder %s30, 0
    %s33 = sadd.s32 %s32, 1
    %s34 = scalar_select %p31, %s32, %s33
    %p37 = pneg %p31
    %p38 = scmp.eq.s32.totalorder %s8, 1
    %p39 = por %p37, %p38
    %p40 = scmp.ne.s32.totalorder %s32, %s35
    %p41 = scmp.eq.s32.totalorder %s8, 0
    %p42 = por %p40, %p41
    %p43 = scmp.ne.s32.totalorder %s32, %s35
    %p44 = scmp.eq.s32.totalorder %s13, 1
    %p45 = por %p43, %p44
    %p46 = scmp.ne.s32.totalorder %s35, %s36
    %p47 = scmp.eq.s32.totalorder %s13, 0
    %p48 = por %p46, %p47
    %p49 = scmp.ne.s32.totalorder %s35, %s36
    %p50 = scmp.eq.s32.totalorder %s14, 1
    %p51 = por %p49, %p50
    %p53 = scmp.ne.s32.totalorder %s36, %s52
    %p54 = scmp.eq.s32.totalorder %s14, 0
    %p55 = por %p53, %p54
    %s57 = sadd.s32 %s56, 1
    %p60 = scmp.eq.s32.totalorder %s8, 1
    %p61 = scmp.ne.s32.totalorder %s56, %s58
    %p62 = scmp.eq.s32.totalorder %s8, 0
    %p63 = por %p61, %p62
    %p64 = scmp.ne.s32.totalorder %s56, %s58
    %p65 = scmp.eq.s32.totalorder %s13, 1
    %p66 = por %p64, %p65
    %p67 = scmp.ne.s32.totalorder %s58, %s59
    %p68 = scmp.eq.s32.totalorder %s13, 0
    %p69 = por %p67, %p68
    %p70 = scmp.ne.s32.totalorder %s58, %s59
    %p71 = scmp.eq.s32.totalorder %s14, 1
    %p72 = por %p70, %p71
    %p74 = scmp.ne.s32.totalorder %s59, %s73
    %p75 = scmp.eq.s32.totalorder %s14, 0
    %p76 = por %p74, %p75
    %s77 = ssub.s32 %s15, %s27
    %p78 = scmp.eq.s32.totalorder %s77, 0
    %s80 = sadd.s32 %s79, 1
    %s81 = scalar_select %p78, %s79, %s80
    %p84 = pneg %p78
    %p85 = scmp.eq.s32.totalorder %s8, 1
    %p86 = por %p84, %p85
    %p87 = scmp.ne.s32.totalorder %s79, %s82
    %p88 = scmp.eq.s32.totalorder %s8, 0
    %p89 = por %p87, %p88
    %p90 = scmp.ne.s32.totalorder %s79, %s82
    %p91 = scmp.eq.s32.totalorder %s13, 1
    %p92 = por %p90, %p91
    %p93 = scmp.ne.s32.totalorder %s82, %s83
    %p94 = scmp.eq.s32.totalorder %s13, 0
    %p95 = por %p93, %p94
    %p96 = scmp.ne.s32.totalorder %s82, %s83
    %p97 = scmp.eq.s32.totalorder %s14, 1
    %p98 = por %p96, %p97
    %p100 = scmp.ne.s32.totalorder %s83, %s99
    %p101 = scmp.eq.s32.totalorder %s14, 0
    %p102 = por %p100, %p101
    %p103 = scmp.le.s32.totalorder 1, %s8
    %p104 = scmp.lt.s32.totalorder %s8, 3
    %p105 = pnand %p103, %p104
    %p106 = pneg %p105
    // Predicated region
    $region9: #{tpu_custom_call.1} parent=5 // pred_check
      _
    $region10: #{tpu_custom_call.1} parent=5 // pred_check_branch
      %108 = sbr.rel (%p105) target = $region12
    $region11: #{tpu_custom_call.1} parent=5 // pred_region
      %s109 = ssub.s32 %s8, 1
      // Predicated region
      $region13: #{tpu_custom_call.1} parent=11 // pred_check
        %p110 = pneg %p69
      $region14: #{tpu_custom_call.1} parent=11 // pred_check_branch
        %112 = sbr.rel (%p110) target = $region16
      $region15: #{tpu_custom_call.1} parent=11 // pred_region
        _
      $region16: #{tpu_custom_call.1} parent=11 // pred_fallthru
        _
    $region12: #{tpu_custom_call.1} parent=5 // pred_fallthru
      _
    %p113 = scmp.lt.s32.totalorder %s8, 2
    // Predicated region
    $region17: #{tpu_custom_call.1} parent=5 // pred_check
      %p114 = pneg %p113
    $region18: #{tpu_custom_call.1} parent=5 // pred_check_branch
      %116 = sbr.rel (%p114) target = $region20
    $region19: #{tpu_custom_call.1} parent=5 // pred_region
      // Predicated region
      $region21: #{tpu_custom_call.1} parent=19 // pred_check
        %p117 = pneg %p42
      $region22: #{tpu_custom_call.1} parent=19 // pred_check_branch
        %119 = sbr.rel (%p117) target = $region24
      $region23: #{tpu_custom_call.1} parent=19 // pred_region
        %s120 = smul.u32 2, %s15
        %s121 = smul.u32 4, %s16
        %p122 = scmp.lt.s32.totalorder %s120, 3
        %s123 = scalar_select %p122, %s120, 3
        %p124 = scmp.lt.s32.totalorder %s121, 3
        %s125 = scalar_select %p124, %s121, 3
        %s126 = smul.addr %s123, 64
        %s127 = sadd.s32 %s125, %s126
        %s128 = smul.addr %s127, 4
        %s129 = scalar_lea.vmem %s0, %s128
        %s130 = smul.u32 2, %s15
        %s131 = smul.u32 4, %s16
      $region24: #{tpu_custom_call.1} parent=19 // pred_fallthru
        _
    $region20: #{tpu_custom_call.1} parent=5 // pred_fallthru
      _
    %p132 = scmp.le.s32.totalorder 1, %s8
    %p133 = scmp.lt.s32.totalorder %s8, 3
    %p134 = pnand %p132, %p133
    %p135 = pneg %p134
    // Predicated region
    $region25: #{tpu_custom_call.1} parent=5 // pred_check
      _
    $region26: #{tpu_custom_call.1} parent=5 // pred_check_branch
      %137 = sbr.rel (%p134) target = $region28
    $region27: #{tpu_custom_call.1} parent=5 // pred_region
      %s138 = ssub.s32 %s8, 1
      %s139 = smul.u32 2, %s17
      %s140 = smul.u32 4, %s18
      %p141 = scmp.lt.s32.totalorder %s139, 3
      %s142 = scalar_select %p141, %s139, 3
      %p143 = scmp.lt.s32.totalorder %s140, 3
      %s144 = scalar_select %p143, %s140, 3
      %s145 = smul.addr %s142, 64
      %s146 = sadd.s32 %s144, %s145
      %s147 = smul.addr %s146, 4
      %s148 = scalar_lea.vmem %s0, %s147
      %p149 = pneg %p48
      %p150 = pneg %p45
      %p151 = pneg %p69
      %p152 = pneg %p66
      %p153 = pneg %p95
      %p154 = pneg %p92
      %s155 = smul.u32 2, %s17
      %p156 = scmp.lt.s32.totalorder %s155, 3
      %s157 = scalar_select %p156, %s155, 3
      %s158 = smul.addr %s157, 2
      %s159 = smul.addr %s158, 8
      %s160 = scalar_lea.vmem %s2, %s159
      %s161 = smul.u32 2, %s17
      %s162 = smul.u32 4, %s18
      %p163 = scmp.lt.s32.totalorder %s161, 3
      %s164 = scalar_select %p163, %s161, 3
      %p165 = scmp.lt.s32.totalorder %s162, 3
      %s166 = scalar_select %p165, %s162, 3
      %s167 = smul.addr %s164, 64
      %s168 = sadd.s32 %s166, %s167
      %s169 = smul.addr %s168, 4
      %s170 = scalar_lea.vmem %s0, %s169
      %s171 = smul.u32 2, %s17
      %s172 = smul.u32 4, %s18
      %s173 = smul.u32 2, %s17
      %p174 = scmp.lt.s32.totalorder %s173, 3
      %s175 = scalar_select %p174, %s173, 3
      %s176 = smul.addr %s175, 2
      %s177 = smul.addr %s176, 8
      %s178 = scalar_lea.vmem %s2, %s177
      %s179 = smul.u32 2, %s17
      %p180 = scmp.eq.s32.totalorder %s18, 0
      // Predicated region
      $region29: #{tpu_custom_call.1} parent=27 // pred_check
        %p181 = pneg %p180
      $region30: #{tpu_custom_call.1} parent=27 // pred_check_branch
        %183 = sbr.rel (%p181) target = $region32
      $region31: #{tpu_custom_call.1} parent=27 // pred_region
        %vm184 = vcmask 7168
        %185 = vst.msk [vmem:[#allocation2] sm:$0xff] %vm184, -inf
        %186 = vst.msk [vmem:[#allocation2 + $0x8] sm:$0xff] %vm184, -inf
        %187 = vst.msk [vmem:[#allocation2 + $0x10] sm:$0xff] %vm184, -inf
        %188 = vst.msk [vmem:[#allocation2 + $0x18] sm:$0xff] %vm184, -inf
        %vm189 = vcmask 23552
        %190 = vst.msk [vmem:[#allocation3] sm:$0xff] %vm189, 0.0
        %191 = vst.msk [vmem:[#allocation3 + $0x8] sm:$0xff] %vm189, 0.0
        %192 = vst.msk [vmem:[#allocation3 + $0x10] sm:$0xff] %vm189, 0.0
        %193 = vst.msk [vmem:[#allocation3 + $0x18] sm:$0xff] %vm189, 0.0
      $region32: #{tpu_custom_call.1} parent=27 // pred_fallthru
        _
      %v194 = vld [vmem:[%s1] sm:$0xff]
      %v195 = vld [vmem:[%s1 + $0x8] sm:$0xff]
      %v196 = vlaneseq
      %v197 = vand.u32 %v196, 127
      %v198 = vadd.s32 %v197, 128
      %v199 = vadd.s32 %v197, 256
      %v200 = vadd.s32 %v197, 384
      %v201 = vld [vmem:[%s170] ss:$4 sm:$0xf]
      %s202 = scalar_lea.vmem %s170, 16
      %v203 = vld [vmem:[%s202] ss:$4 sm:$0xf]
      %s204 = scalar_lea.vmem %s170, 32
      %v205 = vld [vmem:[%s204] ss:$4 sm:$0xf]
      %s206 = scalar_lea.vmem %s170, 48
      %v207 = vld [vmem:[%s206] ss:$4 sm:$0xf]
      %s208 = scalar_lea.vmem %s170, 64
      %v209 = vld [vmem:[%s208] ss:$4 sm:$0xf]
      %s210 = scalar_lea.vmem %s170, 80
      %v211 = vld [vmem:[%s210] ss:$4 sm:$0xf]
      %s212 = scalar_lea.vmem %s170, 96
      %v213 = vld [vmem:[%s212] ss:$4 sm:$0xf]
      %s214 = scalar_lea.vmem %s170, 112
      %v215 = vld [vmem:[%s214] ss:$4 sm:$0xf]
      %s216 = scalar_lea.vmem %s170, 128
      %v217 = vld [vmem:[%s216] ss:$4 sm:$0xf]
      %s218 = scalar_lea.vmem %s170, 144
      %v219 = vld [vmem:[%s218] ss:$4 sm:$0xf]
      %s220 = scalar_lea.vmem %s170, 160
      %v221 = vld [vmem:[%s220] ss:$4 sm:$0xf]
      %s222 = scalar_lea.vmem %s170, 176
      %v223 = vld [vmem:[%s222] ss:$4 sm:$0xf]
      %s224 = scalar_lea.vmem %s170, 192
      %v225 = vld [vmem:[%s224] ss:$4 sm:$0xf]
      %s226 = scalar_lea.vmem %s170, 208
      %v227 = vld [vmem:[%s226] ss:$4 sm:$0xf]
      %s228 = scalar_lea.vmem %s170, 224
      %v229 = vld [vmem:[%s228] ss:$4 sm:$0xf]
      %s230 = scalar_lea.vmem %s170, 240
      %v231 = vld [vmem:[%s230] ss:$4 sm:$0xf]
      %s232 = scalar_lea.vmem %s170, 1
      %v233 = vld [vmem:[%s232] ss:$4 sm:$0xf]
      %s234 = scalar_lea.vmem %s170, 17
      %v235 = vld [vmem:[%s234] ss:$4 sm:$0xf]
      %s236 = scalar_lea.vmem %s170, 33
      %v237 = vld [vmem:[%s236] ss:$4 sm:$0xf]
      %s238 = scalar_lea.vmem %s170, 49
      %v239 = vld [vmem:[%s238] ss:$4 sm:$0xf]
      %s240 = scalar_lea.vmem %s170, 65
      %v241 = vld [vmem:[%s240] ss:$4 sm:$0xf]
      %s242 = scalar_lea.vmem %s170, 81
      %v243 = vld [vmem:[%s242] ss:$4 sm:$0xf]
      %s244 = scalar_lea.vmem %s170, 97
      %v245 = vld [vmem:[%s244] ss:$4 sm:$0xf]
      %s246 = scalar_lea.vmem %s170, 113
      %v247 = vld [vmem:[%s246] ss:$4 sm:$0xf]
      %s248 = scalar_lea.vmem %s170, 129
      %v249 = vld [vmem:[%s248] ss:$4 sm:$0xf]
      %s250 = scalar_lea.vmem %s170, 145
      %v251 = vld [vmem:[%s250] ss:$4 sm:$0xf]
      %s252 = scalar_lea.vmem %s170, 161
      %v253 = vld [vmem:[%s252] ss:$4 sm:$0xf]
      %s254 = scalar_lea.vmem %s170, 177
      %v255 = vld [vmem:[%s254] ss:$4 sm:$0xf]
      %s256 = scalar_lea.vmem %s170, 193
      %v257 = vld [vmem:[%s256] ss:$4 sm:$0xf]
      %s258 = scalar_lea.vmem %s170, 209
      %v259 = vld [vmem:[%s258] ss:$4 sm:$0xf]
      %s260 = scalar_lea.vmem %s170, 225
      %v261 = vld [vmem:[%s260] ss:$4 sm:$0xf]
      %s262 = scalar_lea.vmem %s170, 241
      %v263 = vld [vmem:[%s262] ss:$4 sm:$0xf]
      %s264 = scalar_lea.vmem %s170, 2
      %v265 = vld [vmem:[%s264] ss:$4 sm:$0xf]
      %s266 = scalar_lea.vmem %s170, 18
      %v267 = vld [vmem:[%s266] ss:$4 sm:$0xf]
      %s268 = scalar_lea.vmem %s170, 34
      %v269 = vld [vmem:[%s268] ss:$4 sm:$0xf]
      %s270 = scalar_lea.vmem %s170, 50
      %v271 = vld [vmem:[%s270] ss:$4 sm:$0xf]
      %s272 = scalar_lea.vmem %s170, 66
      %v273 = vld [vmem:[%s272] ss:$4 sm:$0xf]
      %s274 = scalar_lea.vmem %s170, 82
      %v275 = vld [vmem:[%s274] ss:$4 sm:$0xf]
      %s276 = scalar_lea.vmem %s170, 98
      %v277 = vld [vmem:[%s276] ss:$4 sm:$0xf]
      %s278 = scalar_lea.vmem %s170, 114
      %v279 = vld [vmem:[%s278] ss:$4 sm:$0xf]
      %s280 = scalar_lea.vmem %s170, 130
      %v281 = vld [vmem:[%s280] ss:$4 sm:$0xf]
      %s282 = scalar_lea.vmem %s170, 146
      %v283 = vld [vmem:[%s282] ss:$4 sm:$0xf]
      %s284 = scalar_lea.vmem %s170, 162
      %v285 = vld [vmem:[%s284] ss:$4 sm:$0xf]
      %s286 = scalar_lea.vmem %s170, 178
      %v287 = vld [vmem:[%s286] ss:$4 sm:$0xf]
      %s288 = scalar_lea.vmem %s170, 194
      %v289 = vld [vmem:[%s288] ss:$4 sm:$0xf]
      %s290 = scalar_lea.vmem %s170, 210
      %v291 = vld [vmem:[%s290] ss:$4 sm:$0xf]
      %s292 = scalar_lea.vmem %s170, 226
      %v293 = vld [vmem:[%s292] ss:$4 sm:$0xf]
      %s294 = scalar_lea.vmem %s170, 242
      %v295 = vld [vmem:[%s294] ss:$4 sm:$0xf]
      %312 = vst [vmem:[#allocation1] ss:$9 sm:$0xff] %v201
      %s313 = scalar_lea.vmem [#allocation1], 1
      %314 = vst [vmem:[%s313] ss:$9 sm:$0xff] %v203
      %s315 = scalar_lea.vmem [#allocation1], 2
      %316 = vst [vmem:[%s315] ss:$9 sm:$0xff] %v205
      %s317 = scalar_lea.vmem [#allocation1], 3
      %318 = vst [vmem:[%s317] ss:$9 sm:$0xff] %v207
      %s319 = scalar_lea.vmem [#allocation1], 4
      %320 = vst [vmem:[%s319] ss:$9 sm:$0xff] %v209
      %s321 = scalar_lea.vmem [#allocation1], 5
      %322 = vst [vmem:[%s321] ss:$9 sm:$0xff] %v211
      %s323 = scalar_lea.vmem [#allocation1], 6
      %324 = vst [vmem:[%s323] ss:$9 sm:$0xff] %v213
      %s325 = scalar_lea.vmem [#allocation1], 7
      %326 = vst [vmem:[%s325] ss:$9 sm:$0xff] %v215
      %v327 = vld [vmem:[#allocation1] sm:$0xff]
      %v328 = vld [vmem:[#allocation1 + $0x9] sm:$0xff]
      %v329 = vld [vmem:[#allocation1 + $0x12] sm:$0xff]
      %v330 = vld [vmem:[#allocation1 + $0x1b] sm:$0xff]
      %331 = vst [vmem:[#allocation1] ss:$9 sm:$0xff] %v217
      %332 = vst [vmem:[%s313] ss:$9 sm:$0xff] %v219
      %333 = vst [vmem:[%s315] ss:$9 sm:$0xff] %v221
      %334 = vst [vmem:[%s317] ss:$9 sm:$0xff] %v223
      %335 = vst [vmem:[%s319] ss:$9 sm:$0xff] %v225
      %336 = vst [vmem:[%s321] ss:$9 sm:$0xff] %v227
      %337 = vst [vmem:[%s323] ss:$9 sm:$0xff] %v229
      %338 = vst [vmem:[%s325] ss:$9 sm:$0xff] %v231
      %v339 = vld [vmem:[#allocation1] sm:$0xff]
      %v340 = vld [vmem:[#allocation1 + $0x9] sm:$0xff]
      %v341 = vld [vmem:[#allocation1 + $0x12] sm:$0xff]
      %v342 = vld [vmem:[#allocation1 + $0x1b] sm:$0xff]
      %vm351 = vcmask 130048
      %v353 = vsel %vm351, %v194, 0
      %v356 = vsel %vm351, %v195, 0
      %358 = vmatpush.msra.mxu0 0.0
      %359 = vmatpush.msra.mxu0 0.0
      %360 = vmatpush.msra.mxu0 0.0
      %361 = vmatpush.msra.mxu0 0.0
      %362 = vmatpush.msra.mxu0 0.0
      %363 = vmatpush.msra.mxu0 0.0
      %364 = vmatpush.msra.mxu0 0.0
      %365 = vmatpush.msra.mxu0 0.0
      %366 = vmatpush.msra.mxu0 0.0
      %367 = vmatpush.msra.mxu0 0.0
      %368 = vmatpush.msra.mxu0 0.0
      %369 = vmatpush.msra.mxu0 0.0
      %370 = vmatpush.msra.mxu0 0.0
      %371 = vmatpush.msra.mxu0 0.0
      %372 = vmatpush.msra.mxu0 %v339
      %373 = vmatpush.msra.mxu0 %v327
      %374 = vmatmul.f32.gmra.mxu0 %v353
      %v375 = vpop.f32.mrf.mxu0
      %v376 = vadd.f32 0.0, %v375
      %377 = vmatmul.f32.gmra.mxu0 %v356
      %v378 = vpop.f32.mrf.mxu0
      %v379 = vadd.f32 0.0, %v378
      %380 = vdwg.mxu0
      %381 = vmatpush.msra.mxu0 0.0
      %382 = vmatpush.msra.mxu0 0.0
      %383 = vmatpush.msra.mxu0 0.0
      %384 = vmatpush.msra.mxu0 0.0
      %385 = vmatpush.msra.mxu0 0.0
      %386 = vmatpush.msra.mxu0 0.0
      %387 = vmatpush.msra.mxu0 0.0
      %388 = vmatpush.msra.mxu0 0.0
      %389 = vmatpush.msra.mxu0 0.0
      %390 = vmatpush.msra.mxu0 0.0
      %391 = vmatpush.msra.mxu0 0.0
      %392 = vmatpush.msra.mxu0 0.0
      %393 = vmatpush.msra.mxu0 0.0
      %394 = vmatpush.msra.mxu0 0.0
      %395 = vmatpush.msra.mxu0 %v340
      %396 = vmatpush.msra.mxu0 %v328
      %397 = vmatmul.f32.gmra.mxu0 %v353
      %v398 = vpop.f32.mrf.mxu0
      %v399 = vadd.f32 0.0, %v398
      %400 = vmatmul.f32.gmra.mxu0 %v356
      %v401 = vpop.f32.mrf.mxu0
      %v402 = vadd.f32 0.0, %v401
      %403 = vdwg.mxu0
      %404 = vmatpush.msra.mxu0 0.0
      %405 = vmatpush.msra.mxu0 0.0
      %406 = vmatpush.msra.mxu0 0.0
      %407 = vmatpush.msra.mxu0 0.0
      %408 = vmatpush.msra.mxu0 0.0
      %409 = vmatpush.msra.mxu0 0.0
      %410 = vmatpush.msra.mxu0 0.0
      %411 = vmatpush.msra.mxu0 0.0
      %412 = vmatpush.msra.mxu0 0.0
      %413 = vmatpush.msra.mxu0 0.0
      %414 = vmatpush.msra.mxu0 0.0
      %415 = vmatpush.msra.mxu0 0.0
      %416 = vmatpush.msra.mxu0 0.0
      %417 = vmatpush.msra.mxu0 0.0
      %418 = vmatpush.msra.mxu0 %v341
      %419 = vmatpush.msra.mxu0 %v329
      %420 = vmatmul.f32.gmra.mxu0 %v353
      %v421 = vpop.f32.mrf.mxu0
      %v422 = vadd.f32 0.0, %v421
      %423 = vmatmul.f32.gmra.mxu0 %v356
      %v424 = vpop.f32.mrf.mxu0
      %v425 = vadd.f32 0.0, %v424
      %426 = vdwg.mxu0
      %427 = vmatpush.msra.mxu0 0.0
      %428 = vmatpush.msra.mxu0 0.0
      %429 = vmatpush.msra.mxu0 0.0
      %430 = vmatpush.msra.mxu0 0.0
      %431 = vmatpush.msra.mxu0 0.0
      %432 = vmatpush.msra.mxu0 0.0
      %433 = vmatpush.msra.mxu0 0.0
      %434 = vmatpush.msra.mxu0 0.0
      %435 = vmatpush.msra.mxu0 0.0
      %436 = vmatpush.msra.mxu0 0.0
      %437 = vmatpush.msra.mxu0 0.0
      %438 = vmatpush.msra.mxu0 0.0
      %439 = vmatpush.msra.mxu0 0.0
      %440 = vmatpush.msra.mxu0 0.0
      %441 = vmatpush.msra.mxu0 %v342
      %442 = vmatpush.msra.mxu0 %v330
      %443 = vmatmul.f32.gmra.mxu0 %v353
      %v444 = vpop.f32.mrf.mxu0
      %v445 = vadd.f32 0.0, %v444
      %446 = vmatmul.f32.gmra.mxu0 %v356
      %v447 = vpop.f32.mrf.mxu0
      %v448 = vadd.f32 0.0, %v447
      %449 = vdwg.mxu0
      %466 = vst [vmem:[#allocation1] ss:$9 sm:$0xff] %v233
      %s467 = scalar_lea.vmem [#allocation1], 1
      %468 = vst [vmem:[%s467] ss:$9 sm:$0xff] %v235
      %s469 = scalar_lea.vmem [#allocation1], 2
      %470 = vst [vmem:[%s469] ss:$9 sm:$0xff] %v237
      %s471 = scalar_lea.vmem [#allocation1], 3
      %472 = vst [vmem:[%s471] ss:$9 sm:$0xff] %v239
      %s473 = scalar_lea.vmem [#allocation1], 4
      %474 = vst [vmem:[%s473] ss:$9 sm:$0xff] %v241
      %s475 = scalar_lea.vmem [#allocation1], 5
      %476 = vst [vmem:[%s475] ss:$9 sm:$0xff] %v243
      %s477 = scalar_lea.vmem [#allocation1], 6
      %478 = vst [vmem:[%s477] ss:$9 sm:$0xff] %v245
      %s479 = scalar_lea.vmem [#allocation1], 7
      %480 = vst [vmem:[%s479] ss:$9 sm:$0xff] %v247
      %v481 = vld [vmem:[#allocation1] sm:$0xff]
      %v482 = vld [vmem:[#allocation1 + $0x9] sm:$0xff]
      %v483 = vld [vmem:[#allocation1 + $0x12] sm:$0xff]
      %v484 = vld [vmem:[#allocation1 + $0x1b] sm:$0xff]
      %485 = vst [vmem:[#allocation1] ss:$9 sm:$0xff] %v249
      %486 = vst [vmem:[%s467] ss:$9 sm:$0xff] %v251
      %487 = vst [vmem:[%s469] ss:$9 sm:$0xff] %v253
      %488 = vst [vmem:[%s471] ss:$9 sm:$0xff] %v255
      %489 = vst [vmem:[%s473] ss:$9 sm:$0xff] %v257
      %490 = vst [vmem:[%s475] ss:$9 sm:$0xff] %v259
      %491 = vst [vmem:[%s477] ss:$9 sm:$0xff] %v261
      %492 = vst [vmem:[%s479] ss:$9 sm:$0xff] %v263
      %v493 = vld [vmem:[#allocation1] sm:$0xff]
      %v494 = vld [vmem:[#allocation1 + $0x9] sm:$0xff]
      %v495 = vld [vmem:[#allocation1 + $0x12] sm:$0xff]
      %v496 = vld [vmem:[#allocation1 + $0x1b] sm:$0xff]
      %505 = vmatpush.msra.mxu0 0.0
      %506 = vmatpush.msra.mxu0 0.0
      %507 = vmatpush.msra.mxu0 0.0
      %508 = vmatpush.msra.mxu0 0.0
      %509 = vmatpush.msra.mxu0 0.0
      %510 = vmatpush.msra.mxu0 0.0
      %511 = vmatpush.msra.mxu0 0.0
      %512 = vmatpush.msra.mxu0 0.0
      %513 = vmatpush.msra.mxu0 0.0
      %514 = vmatpush.msra.mxu0 0.0
      %515 = vmatpush.msra.mxu0 0.0
      %516 = vmatpush.msra.mxu0 0.0
      %517 = vmatpush.msra.mxu0 0.0
      %518 = vmatpush.msra.mxu0 0.0
      %519 = vmatpush.msra.mxu0 %v493
      %520 = vmatpush.msra.mxu0 %v481
      %521 = vmatmul.f32.gmra.mxu0 %v353
      %v522 = vpop.f32.mrf.mxu0
      %v523 = vadd.f32 0.0, %v522
      %524 = vmatmul.f32.gmra.mxu0 %v356
      %v525 = vpop.f32.mrf.mxu0
      %v526 = vadd.f32 0.0, %v525
      %527 = vdwg.mxu0
      %528 = vmatpush.msra.mxu0 0.0
      %529 = vmatpush.msra.mxu0 0.0
      %530 = vmatpush.msra.mxu0 0.0
      %531 = vmatpush.msra.mxu0 0.0
      %532 = vmatpush.msra.mxu0 0.0
      %533 = vmatpush.msra.mxu0 0.0
      %534 = vmatpush.msra.mxu0 0.0
      %535 = vmatpush.msra.mxu0 0.0
      %536 = vmatpush.msra.mxu0 0.0
      %537 = vmatpush.msra.mxu0 0.0
      %538 = vmatpush.msra.mxu0 0.0
      %539 = vmatpush.msra.mxu0 0.0
      %540 = vmatpush.msra.mxu0 0.0
      %541 = vmatpush.msra.mxu0 0.0
      %542 = vmatpush.msra.mxu0 %v494
      %543 = vmatpush.msra.mxu0 %v482
      %544 = vmatmul.f32.gmra.mxu0 %v353
      %v545 = vpop.f32.mrf.mxu0
      %v546 = vadd.f32 0.0, %v545
      %547 = vmatmul.f32.gmra.mxu0 %v356
      %v548 = vpop.f32.mrf.mxu0
      %v549 = vadd.f32 0.0, %v548
      %550 = vdwg.mxu0
      %551 = vmatpush.msra.mxu0 0.0
      %552 = vmatpush.msra.mxu0 0.0
      %553 = vmatpush.msra.mxu0 0.0
      %554 = vmatpush.msra.mxu0 0.0
      %555 = vmatpush.msra.mxu0 0.0
      %556 = vmatpush.msra.mxu0 0.0
      %557 = vmatpush.msra.mxu0 0.0
      %558 = vmatpush.msra.mxu0 0.0
      %559 = vmatpush.msra.mxu0 0.0
      %560 = vmatpush.msra.mxu0 0.0
      %561 = vmatpush.msra.mxu0 0.0
      %562 = vmatpush.msra.mxu0 0.0
      %563 = vmatpush.msra.mxu0 0.0
      %564 = vmatpush.msra.mxu0 0.0
      %565 = vmatpush.msra.mxu0 %v495
      %566 = vmatpush.msra.mxu0 %v483
      %567 = vmatmul.f32.gmra.mxu0 %v353
      %v568 = vpop.f32.mrf.mxu0
      %v569 = vadd.f32 0.0, %v568
      %570 = vmatmul.f32.gmra.mxu0 %v356
      %v571 = vpop.f32.mrf.mxu0
      %v572 = vadd.f32 0.0, %v571
      %573 = vdwg.mxu0
      %574 = vmatpush.msra.mxu0 0.0
      %575 = vmatpush.msra.mxu0 0.0
      %576 = vmatpush.msra.mxu0 0.0
      %577 = vmatpush.msra.mxu0 0.0
      %578 = vmatpush.msra.mxu0 0.0
      %579 = vmatpush.msra.mxu0 0.0
      %580 = vmatpush.msra.mxu0 0.0
      %581 = vmatpush.msra.mxu0 0.0
      %582 = vmatpush.msra.mxu0 0.0
      %583 = vmatpush.msra.mxu0 0.0
      %584 = vmatpush.msra.mxu0 0.0
      %585 = vmatpush.msra.mxu0 0.0
      %586 = vmatpush.msra.mxu0 0.0
      %587 = vmatpush.msra.mxu0 0.0
      %588 = vmatpush.msra.mxu0 %v496
      %589 = vmatpush.msra.mxu0 %v484
      %590 = vmatmul.f32.gmra.mxu0 %v353
      %v591 = vpop.f32.mrf.mxu0
      %v592 = vadd.f32 0.0, %v591
      %593 = vmatmul.f32.gmra.mxu0 %v356
      %v594 = vpop.f32.mrf.mxu0
      %v595 = vadd.f32 0.0, %v594
      %596 = vdwg.mxu0
      %613 = vst [vmem:[#allocation1] ss:$9 sm:$0xff] %v265
      %s614 = scalar_lea.vmem [#allocation1], 1
      %615 = vst [vmem:[%s614] ss:$9 sm:$0xff] %v267
      %s616 = scalar_lea.vmem [#allocation1], 2
      %617 = vst [vmem:[%s616] ss:$9 sm:$0xff] %v269
      %s618 = scalar_lea.vmem [#allocation1], 3
      %619 = vst [vmem:[%s618] ss:$9 sm:$0xff] %v271
      %s620 = scalar_lea.vmem [#allocation1], 4
      %621 = vst [vmem:[%s620] ss:$9 sm:$0xff] %v273
      %s622 = scalar_lea.vmem [#allocation1], 5
      %623 = vst [vmem:[%s622] ss:$9 sm:$0xff] %v275
      %s624 = scalar_lea.vmem [#allocation1], 6
      %625 = vst [vmem:[%s624] ss:$9 sm:$0xff] %v277
      %s626 = scalar_lea.vmem [#allocation1], 7
      %627 = vst [vmem:[%s626] ss:$9 sm:$0xff] %v279
      %v628 = vld [vmem:[#allocation1] sm:$0xff]
      %v629 = vld [vmem:[#allocation1 + $0x9] sm:$0xff]
      %v630 = vld [vmem:[#allocation1 + $0x12] sm:$0xff]
      %v631 = vld [vmem:[#allocation1 + $0x1b] sm:$0xff]
      %632 = vst [vmem:[#allocation1] ss:$9 sm:$0xff] %v281
      %633 = vst [vmem:[%s614] ss:$9 sm:$0xff] %v283
      %634 = vst [vmem:[%s616] ss:$9 sm:$0xff] %v285
      %635 = vst [vmem:[%s618] ss:$9 sm:$0xff] %v287
      %636 = vst [vmem:[%s620] ss:$9 sm:$0xff] %v289
      %637 = vst [vmem:[%s622] ss:$9 sm:$0xff] %v291
      %638 = vst [vmem:[%s624] ss:$9 sm:$0xff] %v293
      %639 = vst [vmem:[%s626] ss:$9 sm:$0xff] %v295
      %v640 = vld [vmem:[#allocation1] sm:$0xff]
      %v641 = vld [vmem:[#allocation1 + $0x9] sm:$0xff]
      %v642 = vld [vmem:[#allocation1 + $0x12] sm:$0xff]
      %v643 = vld [vmem:[#allocation1 + $0x1b] sm:$0xff]
      %652 = vmatpush.msra.mxu0 0.0
      %653 = vmatpush.msra.mxu0 0.0
      %654 = vmatpush.msra.mxu0 0.0
      %655 = vmatpush.msra.mxu0 0.0
      %656 = vmatpush.msra.mxu0 0.0
      %657 = vmatpush.msra.mxu0 0.0
      %658 = vmatpush.msra.mxu0 0.0
      %659 = vmatpush.msra.mxu0 0.0
      %660 = vmatpush.msra.mxu0 0.0
      %661 = vmatpush.msra.mxu0 0.0
      %662 = vmatpush.msra.mxu0 0.0
      %663 = vmatpush.msra.mxu0 0.0
      %664 = vmatpush.msra.mxu0 0.0
      %665 = vmatpush.msra.mxu0 0.0
      %666 = vmatpush.msra.mxu0 %v640
      %667 = vmatpush.msra.mxu0 %v628
      %668 = vmatmul.f32.gmra.mxu0 %v353
      %v669 = vpop.f32.mrf.mxu0
      %v670 = vadd.f32 0.0, %v669
      %671 = vmatmul.f32.gmra.mxu0 %v356
      %v672 = vpop.f32.mrf.mxu0
      %v673 = vadd.f32 0.0, %v672
      %674 = vdwg.mxu0
      %675 = vmatpush.msra.mxu0 0.0
      %676 = vmatpush.msra.mxu0 0.0
      %677 = vmatpush.msra.mxu0 0.0
      %678 = vmatpush.msra.mxu0 0.0
      %679 = vmatpush.msra.mxu0 0.0
      %680 = vmatpush.msra.mxu0 0.0
      %681 = vmatpush.msra.mxu0 0.0
      %682 = vmatpush.msra.mxu0 0.0
      %683 = vmatpush.msra.mxu0 0.0
      %684 = vmatpush.msra.mxu0 0.0
      %685 = vmatpush.msra.mxu0 0.0
      %686 = vmatpush.msra.mxu0 0.0
      %687 = vmatpush.msra.mxu0 0.0
      %688 = vmatpush.msra.mxu0 0.0
      %689 = vmatpush.msra.mxu0 %v641
      %690 = vmatpush.msra.mxu0 %v629
      %691 = vmatmul.f32.gmra.mxu0 %v353
      %v692 = vpop.f32.mrf.mxu0
      %v693 = vadd.f32 0.0, %v692
      %694 = vmatmul.f32.gmra.mxu0 %v356
      %v695 = vpop.f32.mrf.mxu0
      %v696 = vadd.f32 0.0, %v695
      %697 = vdwg.mxu0
      %698 = vmatpush.msra.mxu0 0.0
      %699 = vmatpush.msra.mxu0 0.0
      %700 = vmatpush.msra.mxu0 0.0
      %701 = vmatpush.msra.mxu0 0.0
      %702 = vmatpush.msra.mxu0 0.0
      %703 = vmatpush.msra.mxu0 0.0
      %704 = vmatpush.msra.mxu0 0.0
      %705 = vmatpush.msra.mxu0 0.0
      %706 = vmatpush.msra.mxu0 0.0
      %707 = vmatpush.msra.mxu0 0.0
      %708 = vmatpush.msra.mxu0 0.0
      %709 = vmatpush.msra.mxu0 0.0
      %710 = vmatpush.msra.mxu0 0.0
      %711 = vmatpush.msra.mxu0 0.0
      %712 = vmatpush.msra.mxu0 %v642
      %713 = vmatpush.msra.mxu0 %v630
      %714 = vmatmul.f32.gmra.mxu0 %v353
      %v715 = vpop.f32.mrf.mxu0
      %v716 = vadd.f32 0.0, %v715
      %717 = vmatmul.f32.gmra.mxu0 %v356
      %v718 = vpop.f32.mrf.mxu0
      %v719 = vadd.f32 0.0, %v718
      %720 = vdwg.mxu0
      %721 = vmatpush.msra.mxu0 0.0
      %722 = vmatpush.msra.mxu0 0.0
      %723 = vmatpush.msra.mxu0 0.0
      %724 = vmatpush.msra.mxu0 0.0
      %725 = vmatpush.msra.mxu0 0.0
      %726 = vmatpush.msra.mxu0 0.0
      %727 = vmatpush.msra.mxu0 0.0
      %728 = vmatpush.msra.mxu0 0.0
      %729 = vmatpush.msra.mxu0 0.0
      %730 = vmatpush.msra.mxu0 0.0
      %731 = vmatpush.msra.mxu0 0.0
      %732 = vmatpush.msra.mxu0 0.0
      %733 = vmatpush.msra.mxu0 0.0
      %734 = vmatpush.msra.mxu0 0.0
      %735 = vmatpush.msra.mxu0 %v643
      %736 = vmatpush.msra.mxu0 %v631
      %737 = vmatmul.f32.gmra.mxu0 %v353
      %v738 = vpop.f32.mrf.mxu0
      %v739 = vadd.f32 0.0, %v738
      %740 = vmatmul.f32.gmra.mxu0 %v356
      %v741 = vpop.f32.mrf.mxu0
      %v742 = vadd.f32 0.0, %v741
      %743 = vdwg.mxu0
      %v752 = vrot.slane %v399, 7
      %v753 = vrot.slane %v422, 6
      %v754 = vrot.slane %v445, 5
      %v755 = vrot.slane %v402, 7
      %v756 = vrot.slane %v425, 6
      %v757 = vrot.slane %v448, 5
      %vm758 = vcmask 1040384
      %v759 = vsel %vm758, %v376, %v752
      %vm760 = vcmask 1042434
      %v761 = vsel %vm760, %v753, %v754
      %vm762 = vcmask 1041408
      %v763 = vsel %vm762, %v759, %v761
      %vm764 = vcmask 1041409
      %v765 = vsel %vm764, %v376, %v752
      %vm766 = vcmask 1043459
      %v767 = vsel %vm766, %v753, %v754
      %vm768 = vcmask 1042433
      %v769 = vsel %vm768, %v765, %v767
      %v770 = vrot.slane %v769, 1
      %v771 = vsel %vm760, %v376, %v752
      %vm772 = vcmask 1044484
      %v773 = vsel %vm772, %v753, %v754
      %vm774 = vcmask 1043458
      %v775 = vsel %vm774, %v771, %v773
      %v776 = vrot.slane %v775, 2
      %v777 = vsel %vm766, %v376, %v752
      %vm778 = vcmask 1045509
      %v779 = vsel %vm778, %v753, %v754
      %vm780 = vcmask 1044483
      %v781 = vsel %vm780, %v777, %v779
      %v782 = vrot.slane %v781, 3
      %v783 = vsel %vm772, %v376, %v752
      %vm784 = vcmask 1046534
      %v785 = vsel %vm784, %v753, %v754
      %vm786 = vcmask 1045508
      %v787 = vsel %vm786, %v783, %v785
      %v788 = vrot.slane %v787, 4
      %v789 = vsel %vm778, %v376, %v752
      %vm790 = vcmask 1046528
      %v791 = vsel %vm790, %v754, %v753
      %vm792 = vcmask 1046533
      %v793 = vsel %vm792, %v789, %v791
      %v794 = vrot.slane %v793, 5
      %v795 = vsel %vm784, %v376, %v752
      %v796 = vsel %vm758, %v753, %v754
      %vm797 = vcmask 1045504
      %v798 = vsel %vm797, %v796, %v795
      %v799 = vrot.slane %v798, 6
      %v800 = vsel %vm790, %v752, %v376
      %v801 = vsel %vm764, %v753, %v754
      %vm802 = vcmask 1046529
      %v803 = vsel %vm802, %v801, %v800
      %v804 = vrot.slane %v803, 7
      %v805 = vsel %vm758, %v379, %v755
      %v806 = vsel %vm760, %v756, %v757
      %v807 = vsel %vm762, %v805, %v806
      %v808 = vsel %vm764, %v379, %v755
      %v809 = vsel %vm766, %v756, %v757
      %v810 = vsel %vm768, %v808, %v809
      %v811 = vrot.slane %v810, 1
      %v812 = vsel %vm760, %v379, %v755
      %v813 = vsel %vm772, %v756, %v757
      %v814 = vsel %vm774, %v812, %v813
      %v815 = vrot.slane %v814, 2
      %v816 = vsel %vm766, %v379, %v755
      %v817 = vsel %vm778, %v756, %v757
      %v818 = vsel %vm780, %v816, %v817
      %v819 = vrot.slane %v818, 3
      %v820 = vsel %vm772, %v379, %v755
      %v821 = vsel %vm784, %v756, %v757
      %v822 = vsel %vm786, %v820, %v821
      %v823 = vrot.slane %v822, 4
      %v824 = vsel %vm778, %v379, %v755
      %v825 = vsel %vm790, %v757, %v756
      %v826 = vsel %vm792, %v824, %v825
      %v827 = vrot.slane %v826, 5
      %v828 = vsel %vm784, %v379, %v755
      %v829 = vsel %vm758, %v756, %v757
      %v830 = vsel %vm797, %v829, %v828
      %v831 = vrot.slane %v830, 6
      %v832 = vsel %vm790, %v755, %v379
      %v833 = vsel %vm764, %v756, %v757
      %v834 = vsel %vm802, %v833, %v832
      %v835 = vrot.slane %v834, 7
      %v852 = vmul.f32 %v201, %v763
      %v853 = vmul.f32 %v203, %v770
      %v854 = vmul.f32 %v205, %v776
      %v855 = vmul.f32 %v207, %v782
      %v856 = vmul.f32 %v209, %v788
      %v857 = vmul.f32 %v211, %v794
      %v858 = vmul.f32 %v213, %v799
      %v859 = vmul.f32 %v215, %v804
      %v860 = vmul.f32 %v217, %v807
      %v861 = vmul.f32 %v219, %v811
      %v862 = vmul.f32 %v221, %v815
      %v863 = vmul.f32 %v223, %v819
      %v864 = vmul.f32 %v225, %v823
      %v865 = vmul.f32 %v227, %v827
      %v866 = vmul.f32 %v229, %v831
      %v867 = vmul.f32 %v231, %v835
      %v876 = vrot.slane %v546, 7
      %v877 = vrot.slane %v569, 6
      %v878 = vrot.slane %v592, 5
      %v879 = vrot.slane %v549, 7
      %v880 = vrot.slane %v572, 6
      %v881 = vrot.slane %v595, 5
      %v882 = vsel %vm758, %v523, %v876
      %v883 = vsel %vm760, %v877, %v878
      %v884 = vsel %vm762, %v882, %v883
      %v885 = vsel %vm764, %v523, %v876
      %v886 = vsel %vm766, %v877, %v878
      %v887 = vsel %vm768, %v885, %v886
      %v888 = vrot.slane %v887, 1
      %v889 = vsel %vm760, %v523, %v876
      %v890 = vsel %vm772, %v877, %v878
      %v891 = vsel %vm774, %v889, %v890
      %v892 = vrot.slane %v891, 2
      %v893 = vsel %vm766, %v523, %v876
      %v894 = vsel %vm778, %v877, %v878
      %v895 = vsel %vm780, %v893, %v894
      %v896 = vrot.slane %v895, 3
      %v897 = vsel %vm772, %v523, %v876
      %v898 = vsel %vm784, %v877, %v878
      %v899 = vsel %vm786, %v897, %v898
      %v900 = vrot.slane %v899, 4
      %v901 = vsel %vm778, %v523, %v876
      %v902 = vsel %vm790, %v878, %v877
      %v903 = vsel %vm792, %v901, %v902
      %v904 = vrot.slane %v903, 5
      %v905 = vsel %vm784, %v523, %v876
      %v906 = vsel %vm758, %v877, %v878
      %v907 = vsel %vm797, %v906, %v905
      %v908 = vrot.slane %v907, 6
      %v909 = vsel %vm790, %v876, %v523
      %v910 = vsel %vm764, %v877, %v878
      %v911 = vsel %vm802, %v910, %v909
      %v912 = vrot.slane %v911, 7
      %v913 = vsel %vm758, %v526, %v879
      %v914 = vsel %vm760, %v880, %v881
      %v915 = vsel %vm762, %v913, %v914
      %v916 = vsel %vm764, %v526, %v879
      %v917 = vsel %vm766, %v880, %v881
      %v918 = vsel %vm768, %v916, %v917
      %v919 = vrot.slane %v918, 1
      %v920 = vsel %vm760, %v526, %v879
      %v921 = vsel %vm772, %v880, %v881
      %v922 = vsel %vm774, %v920, %v921
      %v923 = vrot.slane %v922, 2
      %v924 = vsel %vm766, %v526, %v879
      %v925 = vsel %vm778, %v880, %v881
      %v926 = vsel %vm780, %v924, %v925
      %v927 = vrot.slane %v926, 3
      %v928 = vsel %vm772, %v526, %v879
      %v929 = vsel %vm784, %v880, %v881
      %v930 = vsel %vm786, %v928, %v929
      %v931 = vrot.slane %v930, 4
      %v932 = vsel %vm778, %v526, %v879
      %v933 = vsel %vm790, %v881, %v880
      %v934 = vsel %vm792, %v932, %v933
      %v935 = vrot.slane %v934, 5
      %v936 = vsel %vm784, %v526, %v879
      %v937 = vsel %vm758, %v880, %v881
      %v938 = vsel %vm797, %v937, %v936
      %v939 = vrot.slane %v938, 6
      %v940 = vsel %vm790, %v879, %v526
      %v941 = vsel %vm764, %v880, %v881
      %v942 = vsel %vm802, %v941, %v940
      %v943 = vrot.slane %v942, 7
      %v960 = vmul.f32 %v233, %v884
      %v961 = vmul.f32 %v235, %v888
      %v962 = vmul.f32 %v237, %v892
      %v963 = vmul.f32 %v239, %v896
      %v964 = vmul.f32 %v241, %v900
      %v965 = vmul.f32 %v243, %v904
      %v966 = vmul.f32 %v245, %v908
      %v967 = vmul.f32 %v247, %v912
      %v968 = vmul.f32 %v249, %v915
      %v969 = vmul.f32 %v251, %v919
      %v970 = vmul.f32 %v253, %v923
      %v971 = vmul.f32 %v255, %v927
      %v972 = vmul.f32 %v257, %v931
      %v973 = vmul.f32 %v259, %v935
      %v974 = vmul.f32 %v261, %v939
      %v975 = vmul.f32 %v263, %v943
      %v976 = vadd.f32 %v852, %v960
      %v977 = vadd.f32 %v853, %v961
      %v978 = vadd.f32 %v854, %v962
      %v979 = vadd.f32 %v855, %v963
      %v980 = vadd.f32 %v856, %v964
      %v981 = vadd.f32 %v857, %v965
      %v982 = vadd.f32 %v858, %v966
      %v983 = vadd.f32 %v859, %v967
      %v984 = vadd.f32 %v860, %v968
      %v985 = vadd.f32 %v861, %v969
      %v986 = vadd.f32 %v862, %v970
      %v987 = vadd.f32 %v863, %v971
      %v988 = vadd.f32 %v864, %v972
      %v989 = vadd.f32 %v865, %v973
      %v990 = vadd.f32 %v866, %v974
      %v991 = vadd.f32 %v867, %v975
      %v1000 = vrot.slane %v693, 7
      %v1001 = vrot.slane %v716, 6
      %v1002 = vrot.slane %v739, 5
      %v1003 = vrot.slane %v696, 7
      %v1004 = vrot.slane %v719, 6
      %v1005 = vrot.slane %v742, 5
      %v1006 = vsel %vm758, %v670, %v1000
      %v1007 = vsel %vm760, %v1001, %v1002
      %v1008 = vsel %vm762, %v1006, %v1007
      %v1009 = vsel %vm764, %v670, %v1000
      %v1010 = vsel %vm766, %v1001, %v1002
      %v1011 = vsel %vm768, %v1009, %v1010
      %v1012 = vrot.slane %v1011, 1
      %v1013 = vsel %vm760, %v670, %v1000
      %v1014 = vsel %vm772, %v1001, %v1002
      %v1015 = vsel %vm774, %v1013, %v1014
      %v1016 = vrot.slane %v1015, 2
      %v1017 = vsel %vm766, %v670, %v1000
      %v1018 = vsel %vm778, %v1001, %v1002
      %v1019 = vsel %vm780, %v1017, %v1018
      %v1020 = vrot.slane %v1019, 3
      %v1021 = vsel %vm772, %v670, %v1000
      %v1022 = vsel %vm784, %v1001, %v1002
      %v1023 = vsel %vm786, %v1021, %v1022
      %v1024 = vrot.slane %v1023, 4
      %v1025 = vsel %vm778, %v670, %v1000
      %v1026 = vsel %vm790, %v1002, %v1001
      %v1027 = vsel %vm792, %v1025, %v1026
      %v1028 = vrot.slane %v1027, 5
      %v1029 = vsel %vm784, %v670, %v1000
      %v1030 = vsel %vm758, %v1001, %v1002
      %v1031 = vsel %vm797, %v1030, %v1029
      %v1032 = vrot.slane %v1031, 6
      %v1033 = vsel %vm790, %v1000, %v670
      %v1034 = vsel %vm764, %v1001, %v1002
      %v1035 = vsel %vm802, %v1034, %v1033
      %v1036 = vrot.slane %v1035, 7
      %v1037 = vsel %vm758, %v673, %v1003
      %v1038 = vsel %vm760, %v1004, %v1005
      %v1039 = vsel %vm762, %v1037, %v1038
      %v1040 = vsel %vm764, %v673, %v1003
      %v1041 = vsel %vm766, %v1004, %v1005
      %v1042 = vsel %vm768, %v1040, %v1041
      %v1043 = vrot.slane %v1042, 1
      %v1044 = vsel %vm760, %v673, %v1003
      %v1045 = vsel %vm772, %v1004, %v1005
      %v1046 = vsel %vm774, %v1044, %v1045
      %v1047 = vrot.slane %v1046, 2
      %v1048 = vsel %vm766, %v673, %v1003
      %v1049 = vsel %vm778, %v1004, %v1005
      %v1050 = vsel %vm780, %v1048, %v1049
      %v1051 = vrot.slane %v1050, 3
      %v1052 = vsel %vm772, %v673, %v1003
      %v1053 = vsel %vm784, %v1004, %v1005
      %v1054 = vsel %vm786, %v1052, %v1053
      %v1055 = vrot.slane %v1054, 4
      %v1056 = vsel %vm778, %v673, %v1003
      %v1057 = vsel %vm790, %v1005, %v1004
      %v1058 = vsel %vm792, %v1056, %v1057
      %v1059 = vrot.slane %v1058, 5
      %v1060 = vsel %vm784, %v673, %v1003
      %v1061 = vsel %vm758, %v1004, %v1005
      %v1062 = vsel %vm797, %v1061, %v1060
      %v1063 = vrot.slane %v1062, 6
      %v1064 = vsel %vm790, %v1003, %v673
      %v1065 = vsel %vm764, %v1004, %v1005
      %v1066 = vsel %vm802, %v1065, %v1064
      %v1067 = vrot.slane %v1066, 7
      %v1084 = vmul.f32 %v265, %v1008
      %v1085 = vmul.f32 %v267, %v1012
      %v1086 = vmul.f32 %v269, %v1016
      %v1087 = vmul.f32 %v271, %v1020
      %v1088 = vmul.f32 %v273, %v1024
      %v1089 = vmul.f32 %v275, %v1028
      %v1090 = vmul.f32 %v277, %v1032
      %v1091 = vmul.f32 %v279, %v1036
      %v1092 = vmul.f32 %v281, %v1039
      %v1093 = vmul.f32 %v283, %v1043
      %v1094 = vmul.f32 %v285, %v1047
      %v1095 = vmul.f32 %v287, %v1051
      %v1096 = vmul.f32 %v289, %v1055
      %v1097 = vmul.f32 %v291, %v1059
      %v1098 = vmul.f32 %v293, %v1063
      %v1099 = vmul.f32 %v295, %v1067
      %v1100 = vadd.f32 %v976, %v1084
      %v1101 = vadd.f32 %v977, %v1085
      %v1102 = vadd.f32 %v978, %v1086
      %v1103 = vadd.f32 %v979, %v1087
      %v1104 = vadd.f32 %v980, %v1088
      %v1105 = vadd.f32 %v981, %v1089
      %v1106 = vadd.f32 %v982, %v1090
      %v1107 = vadd.f32 %v983, %v1091
      %v1108 = vadd.f32 %v984, %v1092
      %v1109 = vadd.f32 %v985, %v1093
      %v1110 = vadd.f32 %v986, %v1094
      %v1111 = vadd.f32 %v987, %v1095
      %v1112 = vadd.f32 %v988, %v1096
      %v1113 = vadd.f32 %v989, %v1097
      %v1114 = vadd.f32 %v990, %v1098
      %v1115 = vadd.f32 %v991, %v1099
      %1132 = vst [vmem:[#allocation1] ss:$9 sm:$0xff] %v1100
      %s1133 = scalar_lea.vmem [#allocation1], 1
      %1134 = vst [vmem:[%s1133] ss:$9 sm:$0xff] %v1101
      %s1135 = scalar_lea.vmem [#allocation1], 2
      %1136 = vst [vmem:[%s1135] ss:$9 sm:$0xff] %v1102
      %s1137 = scalar_lea.vmem [#allocation1], 3
      %1138 = vst [vmem:[%s1137] ss:$9 sm:$0xff] %v1103
      %s1139 = scalar_lea.vmem [#allocation1], 4
      %1140 = vst [vmem:[%s1139] ss:$9 sm:$0xff] %v1104
      %s1141 = scalar_lea.vmem [#allocation1], 5
      %1142 = vst [vmem:[%s1141] ss:$9 sm:$0xff] %v1105
      %s1143 = scalar_lea.vmem [#allocation1], 6
      %1144 = vst [vmem:[%s1143] ss:$9 sm:$0xff] %v1106
      %s1145 = scalar_lea.vmem [#allocation1], 7
      %1146 = vst [vmem:[%s1145] ss:$9 sm:$0xff] %v1107
      %v1147 = vld [vmem:[#allocation1] sm:$0xff]
      %v1148 = vld [vmem:[#allocation1 + $0x9] sm:$0xff]
      %v1149 = vld [vmem:[#allocation1 + $0x12] sm:$0xff]
      %v1150 = vld [vmem:[#allocation1 + $0x1b] sm:$0xff]
      %1151 = vst [vmem:[#allocation1] ss:$9 sm:$0xff] %v1108
      %1152 = vst [vmem:[%s1133] ss:$9 sm:$0xff] %v1109
      %1153 = vst [vmem:[%s1135] ss:$9 sm:$0xff] %v1110
      %1154 = vst [vmem:[%s1137] ss:$9 sm:$0xff] %v1111
      %1155 = vst [vmem:[%s1139] ss:$9 sm:$0xff] %v1112
      %1156 = vst [vmem:[%s1141] ss:$9 sm:$0xff] %v1113
      %1157 = vst [vmem:[%s1143] ss:$9 sm:$0xff] %v1114
      %1158 = vst [vmem:[%s1145] ss:$9 sm:$0xff] %v1115
      %v1159 = vld [vmem:[#allocation1] sm:$0xff]
      %v1160 = vld [vmem:[#allocation1 + $0x9] sm:$0xff]
      %v1161 = vld [vmem:[#allocation1 + $0x12] sm:$0xff]
      %v1162 = vld [vmem:[#allocation1 + $0x1b] sm:$0xff]
      %v1171 = vmax.f32 %v1147, %v1149
      %v1172 = vmax.f32 %v1148, %v1150
      %v1173 = vmax.f32 %v1171, %v1172
      %1174 = vmax.xlane.f32.xlu0 %v1173
      %v1175 = vpop.xlane.xlu0 %1174
      %v1176 = vmax.f32 %v1159, %v1161
      %v1177 = vmax.f32 %v1160, %v1162
      %v1178 = vmax.f32 %v1176, %v1177
      %1179 = vmax.xlane.f32.xlu0 %v1178
      %v1180 = vpop.xlane.xlu0 %1179
      %v1183 = vperm.slane %v1175, 0
      %v1184 = vperm.slane %v1175, 1
      %v1185 = vperm.slane %v1175, 2
      %v1186 = vperm.slane %v1175, 3
      %v1187 = vperm.slane %v1175, 4
      %v1188 = vperm.slane %v1175, 5
      %v1189 = vperm.slane %v1175, 6
      %v1190 = vperm.slane %v1175, 7
      %v1191 = vperm.slane %v1180, 0
      %v1192 = vperm.slane %v1180, 1
      %v1193 = vperm.slane %v1180, 2
      %v1194 = vperm.slane %v1180, 3
      %v1195 = vperm.slane %v1180, 4
      %v1196 = vperm.slane %v1180, 5
      %v1197 = vperm.slane %v1180, 6
      %v1198 = vperm.slane %v1180, 7
      %vm1215 = vcmp.eq.f32.partialorder %v1100, %v1183
      %vm1216 = vcmp.eq.f32.partialorder %v1101, %v1184
      %vm1217 = vcmp.eq.f32.partialorder %v1102, %v1185
      %vm1218 = vcmp.eq.f32.partialorder %v1103, %v1186
      %vm1219 = vcmp.eq.f32.partialorder %v1104, %v1187
      %vm1220 = vcmp.eq.f32.partialorder %v1105, %v1188
      %vm1221 = vcmp.eq.f32.partialorder %v1106, %v1189
      %vm1222 = vcmp.eq.f32.partialorder %v1107, %v1190
      %vm1223 = vcmp.eq.f32.partialorder %v1108, %v1191
      %vm1224 = vcmp.eq.f32.partialorder %v1109, %v1192
      %vm1225 = vcmp.eq.f32.partialorder %v1110, %v1193
      %vm1226 = vcmp.eq.f32.partialorder %v1111, %v1194
      %vm1227 = vcmp.eq.f32.partialorder %v1112, %v1195
      %vm1228 = vcmp.eq.f32.partialorder %v1113, %v1196
      %vm1229 = vcmp.eq.f32.partialorder %v1114, %v1197
      %vm1230 = vcmp.eq.f32.partialorder %v1115, %v1198
      %v1231 = vrot.slane %v198, 7
      %v1232 = vrot.slane %v199, 6
      %v1233 = vrot.slane %v200, 5
      %v1234 = vsel %vm758, %v197, %v1231
      %v1235 = vsel %vm760, %v1232, %v1233
      %v1236 = vsel %vm762, %v1234, %v1235
      %v1237 = vsel %vm764, %v197, %v1231
      %v1238 = vsel %vm766, %v1232, %v1233
      %v1239 = vsel %vm768, %v1237, %v1238
      %v1240 = vrot.slane %v1239, 1
      %v1241 = vsel %vm760, %v197, %v1231
      %v1242 = vsel %vm772, %v1232, %v1233
      %v1243 = vsel %vm774, %v1241, %v1242
      %v1244 = vrot.slane %v1243, 2
      %v1245 = vsel %vm766, %v197, %v1231
      %v1246 = vsel %vm778, %v1232, %v1233
      %v1247 = vsel %vm780, %v1245, %v1246
      %v1248 = vrot.slane %v1247, 3
      %v1249 = vsel %vm772, %v197, %v1231
      %v1250 = vsel %vm784, %v1232, %v1233
      %v1251 = vsel %vm786, %v1249, %v1250
      %v1252 = vrot.slane %v1251, 4
      %v1253 = vsel %vm778, %v197, %v1231
      %v1254 = vsel %vm790, %v1233, %v1232
      %v1255 = vsel %vm792, %v1253, %v1254
      %v1256 = vrot.slane %v1255, 5
      %v1257 = vsel %vm784, %v197, %v1231
      %v1258 = vsel %vm758, %v1232, %v1233
      %v1259 = vsel %vm797, %v1258, %v1257
      %v1260 = vrot.slane %v1259, 6
      %v1261 = vsel %vm790, %v1231, %v197
      %v1262 = vsel %vm764, %v1232, %v1233
      %v1263 = vsel %vm802, %v1262, %v1261
      %v1264 = vrot.slane %v1263, 7
      %v1265 = vsel %vm1215, %v1236, 512
      %v1266 = vsel %vm1216, %v1240, 512
      %v1267 = vsel %vm1217, %v1244, 512
      %v1268 = vsel %vm1218, %v1248, 512
      %v1269 = vsel %vm1219, %v1252, 512
      %v1270 = vsel %vm1220, %v1256, 512
      %v1271 = vsel %vm1221, %v1260, 512
      %v1272 = vsel %vm1222, %v1264, 512
      %v1273 = vsel %vm1223, %v1236, 512
      %v1274 = vsel %vm1224, %v1240, 512
      %v1275 = vsel %vm1225, %v1244, 512
      %v1276 = vsel %vm1226, %v1248, 512
      %v1277 = vsel %vm1227, %v1252, 512
      %v1278 = vsel %vm1228, %v1256, 512
      %v1279 = vsel %vm1229, %v1260, 512
      %v1280 = vsel %vm1230, %v1264, 512
      %1281 = vst [vmem:[#allocation1] ss:$9 sm:$0xff] %v1265
      %s1282 = scalar_lea.vmem [#allocation1], 1
      %1283 = vst [vmem:[%s1282] ss:$9 sm:$0xff] %v1266
      %s1284 = scalar_lea.vmem [#allocation1], 2
      %1285 = vst [vmem:[%s1284] ss:$9 sm:$0xff] %v1267
      %s1286 = scalar_lea.vmem [#allocation1], 3
      %1287 = vst [vmem:[%s1286] ss:$9 sm:$0xff] %v1268
      %s1288 = scalar_lea.vmem [#allocation1], 4
      %1289 = vst [vmem:[%s1288] ss:$9 sm:$0xff] %v1269
      %s1290 = scalar_lea.vmem [#allocation1], 5
      %1291 = vst [vmem:[%s1290] ss:$9 sm:$0xff] %v1270
      %s1292 = scalar_lea.vmem [#allocation1], 6
      %1293 = vst [vmem:[%s1292] ss:$9 sm:$0xff] %v1271
      %s1294 = scalar_lea.vmem [#allocation1], 7
      %1295 = vst [vmem:[%s1294] ss:$9 sm:$0xff] %v1272
      %v1296 = vld [vmem:[#allocation1] sm:$0xff]
      %v1297 = vld [vmem:[#allocation1 + $0x9] sm:$0xff]
      %v1298 = vld [vmem:[#allocation1 + $0x12] sm:$0xff]
      %v1299 = vld [vmem:[#allocation1 + $0x1b] sm:$0xff]
      %1300 = vst [vmem:[#allocation1] ss:$9 sm:$0xff] %v1273
      %1301 = vst [vmem:[%s1282] ss:$9 sm:$0xff] %v1274
      %1302 = vst [vmem:[%s1284] ss:$9 sm:$0xff] %v1275
      %1303 = vst [vmem:[%s1286] ss:$9 sm:$0xff] %v1276
      %1304 = vst [vmem:[%s1288] ss:$9 sm:$0xff] %v1277
      %1305 = vst [vmem:[%s1290] ss:$9 sm:$0xff] %v1278
      %1306 = vst [vmem:[%s1292] ss:$9 sm:$0xff] %v1279
      %1307 = vst [vmem:[%s1294] ss:$9 sm:$0xff] %v1280
      %v1308 = vld [vmem:[#allocation1] sm:$0xff]
      %v1309 = vld [vmem:[#allocation1 + $0x9] sm:$0xff]
      %v1310 = vld [vmem:[#allocation1 + $0x12] sm:$0xff]
      %v1311 = vld [vmem:[#allocation1 + $0x1b] sm:$0xff]
      %vm1312 = vcmp.lt.s32.totalorder %v1296, %v1298
      %v1313 = vsel %vm1312, %v1296, %v1298
      %vm1314 = vcmp.lt.s32.totalorder %v1297, %v1299
      %v1315 = vsel %vm1314, %v1297, %v1299
      %vm1316 = vcmp.lt.s32.totalorder %v1313, %v1315
      %v1317 = vsel %vm1316, %v1313, %v1315
      %v1318 = vand.u32 %v1317, 65535
      %v1319 = vshra.s32 %v1317, 16
      %v1320 = vcvt.s32.f32 %v1318
      %v1321 = vcvt.s32.f32 %v1319
      %1322 = vmin.xlane.f32.xlu0 %v1321
      %v1323 = vpop.xlane.xlu0 %1322
      %vm1324 = vcmp.eq.f32.partialorder %v1321, %v1323
      %v1325 = vsel %vm1324, %v1320, inf
      %1326 = vmin.xlane.f32.xlu0 %v1325
      %v1327 = vpop.xlane.xlu0 %1326
      %v1328 = vcvt.f32.s32 %v1327
      %v1329 = vcvt.f32.s32 %v1323
      %v1330 = vshll.u32 %v1329, 16
      %v1331 = vadd.s32 %v1330, %v1328
      %vm1332 = vcmp.lt.s32.totalorder %v1308, %v1310
      %v1333 = vsel %vm1332, %v1308, %v1310
      %vm1334 = vcmp.lt.s32.totalorder %v1309, %v1311
      %v1335 = vsel %vm1334, %v1309, %v1311
      %vm1336 = vcmp.lt.s32.totalorder %v1333, %v1335
      %v1337 = vsel %vm1336, %v1333, %v1335
      %v1338 = vand.u32 %v1337, 65535
      %v1339 = vshra.s32 %v1337, 16
      %v1340 = vcvt.s32.f32 %v1338
      %v1341 = vcvt.s32.f32 %v1339
      %1342 = vmin.xlane.f32.xlu0 %v1341
      %v1343 = vpop.xlane.xlu0 %1342
      %vm1344 = vcmp.eq.f32.partialorder %v1341, %v1343
      %v1345 = vsel %vm1344, %v1340, inf
      %1346 = vmin.xlane.f32.xlu0 %v1345
      %v1347 = vpop.xlane.xlu0 %1346
      %v1348 = vcvt.f32.s32 %v1347
      %v1349 = vcvt.f32.s32 %v1343
      %v1350 = vshll.u32 %v1349, 16
      %v1351 = vadd.s32 %v1350, %v1348
      %vm1352 = vcmp.eq.s32.totalorder %v197, %v1331
      %vm1353 = vcmp.eq.s32.totalorder %v198, %v1331
      %vm1354 = vcmp.eq.s32.totalorder %v199, %v1331
      %vm1355 = vcmp.eq.s32.totalorder %v200, %v1331
      %vm1356 = vcmp.eq.s32.totalorder %v197, %v1351
      %vm1357 = vcmp.eq.s32.totalorder %v198, %v1351
      %vm1358 = vcmp.eq.s32.totalorder %v199, %v1351
      %vm1359 = vcmp.eq.s32.totalorder %v200, %v1351
      %1360 = vst [vmem:[#allocation1] ss:$9 sm:$0xff] %v201
      %s1361 = scalar_lea.vmem [#allocation1], 1
      %1362 = vst [vmem:[%s1361] ss:$9 sm:$0xff] %v203
      %s1363 = scalar_lea.vmem [#allocation1], 2
      %1364 = vst [vmem:[%s1363] ss:$9 sm:$0xff] %v205
      %s1365 = scalar_lea.vmem [#allocation1], 3
      %1366 = vst [vmem:[%s1365] ss:$9 sm:$0xff] %v207
      %s1367 = scalar_lea.vmem [#allocation1], 4
      %1368 = vst [vmem:[%s1367] ss:$9 sm:$0xff] %v209
      %s1369 = scalar_lea.vmem [#allocation1], 5
      %1370 = vst [vmem:[%s1369] ss:$9 sm:$0xff] %v211
      %s1371 = scalar_lea.vmem [#allocation1], 6
      %1372 = vst [vmem:[%s1371] ss:$9 sm:$0xff] %v213
      %s1373 = scalar_lea.vmem [#allocation1], 7
      %1374 = vst [vmem:[%s1373] ss:$9 sm:$0xff] %v215
      %v1375 = vld [vmem:[#allocation1] sm:$0xff]
      %v1376 = vld [vmem:[#allocation1 + $0x9] sm:$0xff]
      %v1377 = vld [vmem:[#allocation1 + $0x12] sm:$0xff]
      %v1378 = vld [vmem:[#allocation1 + $0x1b] sm:$0xff]
      %1379 = vst [vmem:[#allocation1] ss:$9 sm:$0xff] %v217
      %1380 = vst [vmem:[%s1361] ss:$9 sm:$0xff] %v219
      %1381 = vst [vmem:[%s1363] ss:$9 sm:$0xff] %v221
      %1382 = vst [vmem:[%s1365] ss:$9 sm:$0xff] %v223
      %1383 = vst [vmem:[%s1367] ss:$9 sm:$0xff] %v225
      %1384 = vst [vmem:[%s1369] ss:$9 sm:$0xff] %v227
      %1385 = vst [vmem:[%s1371] ss:$9 sm:$0xff] %v229
      %1386 = vst [vmem:[%s1373] ss:$9 sm:$0xff] %v231
      %v1387 = vld [vmem:[#allocation1] sm:$0xff]
      %v1388 = vld [vmem:[#allocation1 + $0x9] sm:$0xff]
      %v1389 = vld [vmem:[#allocation1 + $0x12] sm:$0xff]
      %v1390 = vld [vmem:[#allocation1 + $0x1b] sm:$0xff]
      %v1399 = vsel %vm1352, %v1375, 0.0
      %v1400 = vsel %vm1353, %v1376, 0.0
      %v1401 = vsel %vm1354, %v1377, 0.0
      %v1402 = vsel %vm1355, %v1378, 0.0
      %v1403 = vsel %vm1356, %v1387, 0.0
      %v1404 = vsel %vm1357, %v1388, 0.0
      %v1405 = vsel %vm1358, %v1389, 0.0
      %v1406 = vsel %vm1359, %v1390, 0.0
      %v1407 = vadd.f32 %v1399, %v1400
      %v1408 = vadd.f32 %v1407, %v1401
      %v1409 = vadd.f32 %v1408, %v1402
      %1410 = vadd.xlane.f32.xlu0 %v1409
      %v1411 = vpop.xlane.xlu0 %1410
      %v1412 = vadd.f32 %v1403, %v1404
      %v1413 = vadd.f32 %v1412, %v1405
      %v1414 = vadd.f32 %v1413, %v1406
      %1415 = vadd.xlane.f32.xlu0 %v1414
      %v1416 = vpop.xlane.xlu0 %1415
      %1417 = vst [vmem:[#allocation1] ss:$9 sm:$0xff] %v233
      %s1418 = scalar_lea.vmem [#allocation1], 1
      %1419 = vst [vmem:[%s1418] ss:$9 sm:$0xff] %v235
      %s1420 = scalar_lea.vmem [#allocation1], 2
      %1421 = vst [vmem:[%s1420] ss:$9 sm:$0xff] %v237
      %s1422 = scalar_lea.vmem [#allocation1], 3
      %1423 = vst [vmem:[%s1422] ss:$9 sm:$0xff] %v239
      %s1424 = scalar_lea.vmem [#allocation1], 4
      %1425 = vst [vmem:[%s1424] ss:$9 sm:$0xff] %v241
      %s1426 = scalar_lea.vmem [#allocation1], 5
      %1427 = vst [vmem:[%s1426] ss:$9 sm:$0xff] %v243
      %s1428 = scalar_lea.vmem [#allocation1], 6
      %1429 = vst [vmem:[%s1428] ss:$9 sm:$0xff] %v245
      %s1430 = scalar_lea.vmem [#allocation1], 7
      %1431 = vst [vmem:[%s1430] ss:$9 sm:$0xff] %v247
      %v1432 = vld [vmem:[#allocation1] sm:$0xff]
      %v1433 = vld [vmem:[#allocation1 + $0x9] sm:$0xff]
      %v1434 = vld [vmem:[#allocation1 + $0x12] sm:$0xff]
      %v1435 = vld [vmem:[#allocation1 + $0x1b] sm:$0xff]
      %1436 = vst [vmem:[#allocation1] ss:$9 sm:$0xff] %v249
      %1437 = vst [vmem:[%s1418] ss:$9 sm:$0xff] %v251
      %1438 = vst [vmem:[%s1420] ss:$9 sm:$0xff] %v253
      %1439 = vst [vmem:[%s1422] ss:$9 sm:$0xff] %v255
      %1440 = vst [vmem:[%s1424] ss:$9 sm:$0xff] %v257
      %1441 = vst [vmem:[%s1426] ss:$9 sm:$0xff] %v259
      %1442 = vst [vmem:[%s1428] ss:$9 sm:$0xff] %v261
      %1443 = vst [vmem:[%s1430] ss:$9 sm:$0xff] %v263
      %v1444 = vld [vmem:[#allocation1] sm:$0xff]
      %v1445 = vld [vmem:[#allocation1 + $0x9] sm:$0xff]
      %v1446 = vld [vmem:[#allocation1 + $0x12] sm:$0xff]
      %v1447 = vld [vmem:[#allocation1 + $0x1b] sm:$0xff]
      %v1456 = vsel %vm1352, %v1432, 0.0
      %v1457 = vsel %vm1353, %v1433, 0.0
      %v1458 = vsel %vm1354, %v1434, 0.0
      %v1459 = vsel %vm1355, %v1435, 0.0
      %v1460 = vsel %vm1356, %v1444, 0.0
      %v1461 = vsel %vm1357, %v1445, 0.0
      %v1462 = vsel %vm1358, %v1446, 0.0
      %v1463 = vsel %vm1359, %v1447, 0.0
      %v1464 = vadd.f32 %v1456, %v1457
      %v1465 = vadd.f32 %v1464, %v1458
      %v1466 = vadd.f32 %v1465, %v1459
      %1467 = vadd.xlane.f32.xlu0 %v1466
      %v1468 = vpop.xlane.xlu0 %1467
      %v1469 = vadd.f32 %v1460, %v1461
      %v1470 = vadd.f32 %v1469, %v1462
      %v1471 = vadd.f32 %v1470, %v1463
      %1472 = vadd.xlane.f32.xlu0 %v1471
      %v1473 = vpop.xlane.xlu0 %1472
      %1474 = vst [vmem:[#allocation1] ss:$9 sm:$0xff] %v265
      %s1475 = scalar_lea.vmem [#allocation1], 1
      %1476 = vst [vmem:[%s1475] ss:$9 sm:$0xff] %v267
      %s1477 = scalar_lea.vmem [#allocation1], 2
      %1478 = vst [vmem:[%s1477] ss:$9 sm:$0xff] %v269
      %s1479 = scalar_lea.vmem [#allocation1], 3
      %1480 = vst [vmem:[%s1479] ss:$9 sm:$0xff] %v271
      %s1481 = scalar_lea.vmem [#allocation1], 4
      %1482 = vst [vmem:[%s1481] ss:$9 sm:$0xff] %v273
      %s1483 = scalar_lea.vmem [#allocation1], 5
      %1484 = vst [vmem:[%s1483] ss:$9 sm:$0xff] %v275
      %s1485 = scalar_lea.vmem [#allocation1], 6
      %1486 = vst [vmem:[%s1485] ss:$9 sm:$0xff] %v277
      %s1487 = scalar_lea.vmem [#allocation1], 7
      %1488 = vst [vmem:[%s1487] ss:$9 sm:$0xff] %v279
      %v1489 = vld [vmem:[#allocation1] sm:$0xff]
      %v1490 = vld [vmem:[#allocation1 + $0x9] sm:$0xff]
      %v1491 = vld [vmem:[#allocation1 + $0x12] sm:$0xff]
      %v1492 = vld [vmem:[#allocation1 + $0x1b] sm:$0xff]
      %1493 = vst [vmem:[#allocation1] ss:$9 sm:$0xff] %v281
      %1494 = vst [vmem:[%s1475] ss:$9 sm:$0xff] %v283
      %1495 = vst [vmem:[%s1477] ss:$9 sm:$0xff] %v285
      %1496 = vst [vmem:[%s1479] ss:$9 sm:$0xff] %v287
      %1497 = vst [vmem:[%s1481] ss:$9 sm:$0xff] %v289
      %1498 = vst [vmem:[%s1483] ss:$9 sm:$0xff] %v291
      %1499 = vst [vmem:[%s1485] ss:$9 sm:$0xff] %v293
      %1500 = vst [vmem:[%s1487] ss:$9 sm:$0xff] %v295
      %v1501 = vld [vmem:[#allocation1] sm:$0xff]
      %v1502 = vld [vmem:[#allocation1 + $0x9] sm:$0xff]
      %v1503 = vld [vmem:[#allocation1 + $0x12] sm:$0xff]
      %v1504 = vld [vmem:[#allocation1 + $0x1b] sm:$0xff]
      %v1513 = vsel %vm1352, %v1489, 0.0
      %v1514 = vsel %vm1353, %v1490, 0.0
      %v1515 = vsel %vm1354, %v1491, 0.0
      %v1516 = vsel %vm1355, %v1492, 0.0
      %v1517 = vsel %vm1356, %v1501, 0.0
      %v1518 = vsel %vm1357, %v1502, 0.0
      %v1519 = vsel %vm1358, %v1503, 0.0
      %v1520 = vsel %vm1359, %v1504, 0.0
      %v1521 = vadd.f32 %v1513, %v1514
      %v1522 = vadd.f32 %v1521, %v1515
      %v1523 = vadd.f32 %v1522, %v1516
      %1524 = vadd.xlane.f32.xlu0 %v1523
      %v1525 = vpop.xlane.xlu0 %1524
      %v1526 = vadd.f32 %v1517, %v1518
      %v1527 = vadd.f32 %v1526, %v1519
      %v1528 = vadd.f32 %v1527, %v1520
      %1529 = vadd.xlane.f32.xlu0 %v1528
      %v1530 = vpop.xlane.xlu0 %1529
      %vm1531 = vcmask 7168
      %v1532 = vsel %vm1531, %v1411, %v1468
      %v1533 = vsel %vm1531, %v1416, %v1473
      %vm1534 = vcmask 15360
      %v1535 = vsel %vm1534, %v1532, %v1525
      %v1536 = vsel %vm1534, %v1533, %v1530
      %v1537 = vld [vmem:[#allocation2] sm:$0xff]
      %v1538 = vld [vmem:[#allocation2 + $0x8] sm:$0xff]
      %vm1539 = vcmp.gt.f32.partialorder %v1175, %v1537
      %vm1540 = vcmp.gt.f32.partialorder %v1180, %v1538
      %v1541 = vsel %vm1539, %v1175, %v1537
      %v1542 = vsel %vm1540, %v1180, %v1538
      %1543 = vst.msk [vmem:[#allocation2] sm:$0xff] %vm1531, %v1541
      %1544 = vst.msk [vmem:[#allocation2 + $0x8] sm:$0xff] %vm1531, %v1542
      %v1545 = vld [vmem:[#allocation3] sm:$0xff]
      %v1546 = vld [vmem:[#allocation3 + $0x8] sm:$0xff]
      %v1547 = vsel %vm1539, 1, 0
      %v1548 = vsel %vm1540, 1, 0
      %1549 = vset.pattern.permute.xlu0 0
      %1550 = vperm.xlu0 %1549, %v1547
      %v1551 = vpop.permute.xlu0 %1550
      %1552 = vset.pattern.permute.xlu0 0
      %1553 = vperm.xlu0 %1552, %v1548
      %v1554 = vpop.permute.xlu0 %1553
      %vm1555 = vcmp.eq.s32.totalorder %v1551, 1
      %vm1556 = vcmp.eq.s32.totalorder %v1554, 1
      %v1557 = vsel %vm1555, %v1535, %v1545
      %v1558 = vsel %vm1556, %v1536, %v1546
      %vm1559 = vcmask 23552
      %1560 = vst.msk [vmem:[#allocation3] sm:$0xff] %vm1559, %v1557
      %1561 = vst.msk [vmem:[#allocation3 + $0x8] sm:$0xff] %vm1559, %v1558
      %s1562 = scalar_lea.vmem %s170, 256
      %v1563 = vld [vmem:[%s1562] ss:$4 sm:$0xf]
      %s1564 = scalar_lea.vmem %s1562, 16
      %v1565 = vld [vmem:[%s1564] ss:$4 sm:$0xf]
      %s1566 = scalar_lea.vmem %s1562, 32
      %v1567 = vld [vmem:[%s1566] ss:$4 sm:$0xf]
      %s1568 = scalar_lea.vmem %s1562, 48
      %v1569 = vld [vmem:[%s1568] ss:$4 sm:$0xf]
      %s1570 = scalar_lea.vmem %s1562, 64
      %v1571 = vld [vmem:[%s1570] ss:$4 sm:$0xf]
      %s1572 = scalar_lea.vmem %s1562, 80
      %v1573 = vld [vmem:[%s1572] ss:$4 sm:$0xf]
      %s1574 = scalar_lea.vmem %s1562, 96
      %v1575 = vld [vmem:[%s1574] ss:$4 sm:$0xf]
      %s1576 = scalar_lea.vmem %s1562, 112
      %v1577 = vld [vmem:[%s1576] ss:$4 sm:$0xf]
      %s1578 = scalar_lea.vmem %s1562, 128
      %v1579 = vld [vmem:[%s1578] ss:$4 sm:$0xf]
      %s1580 = scalar_lea.vmem %s1562, 144
      %v1581 = vld [vmem:[%s1580] ss:$4 sm:$0xf]
      %s1582 = scalar_lea.vmem %s1562, 160
      %v1583 = vld [vmem:[%s1582] ss:$4 sm:$0xf]
      %s1584 = scalar_lea.vmem %s1562, 176
      %v1585 = vld [vmem:[%s1584] ss:$4 sm:$0xf]
      %s1586 = scalar_lea.vmem %s1562, 192
      %v1587 = vld [vmem:[%s1586] ss:$4 sm:$0xf]
      %s1588 = scalar_lea.vmem %s1562, 208
      %v1589 = vld [vmem:[%s1588] ss:$4 sm:$0xf]
      %s1590 = scalar_lea.vmem %s1562, 224
      %v1591 = vld [vmem:[%s1590] ss:$4 sm:$0xf]
      %s1592 = scalar_lea.vmem %s1562, 240
      %v1593 = vld [vmem:[%s1592] ss:$4 sm:$0xf]
      %s1594 = scalar_lea.vmem %s1562, 1
      %v1595 = vld [vmem:[%s1594] ss:$4 sm:$0xf]
      %s1596 = scalar_lea.vmem %s1562, 17
      %v1597 = vld [vmem:[%s1596] ss:$4 sm:$0xf]
      %s1598 = scalar_lea.vmem %s1562, 33
      %v1599 = vld [vmem:[%s1598] ss:$4 sm:$0xf]
      %s1600 = scalar_lea.vmem %s1562, 49
      %v1601 = vld [vmem:[%s1600] ss:$4 sm:$0xf]
      %s1602 = scalar_lea.vmem %s1562, 65
      %v1603 = vld [vmem:[%s1602] ss:$4 sm:$0xf]
      %s1604 = scalar_lea.vmem %s1562, 81
      %v1605 = vld [vmem:[%s1604] ss:$4 sm:$0xf]
      %s1606 = scalar_lea.vmem %s1562, 97
      %v1607 = vld [vmem:[%s1606] ss:$4 sm:$0xf]
      %s1608 = scalar_lea.vmem %s1562, 113
      %v1609 = vld [vmem:[%s1608] ss:$4 sm:$0xf]
      %s1610 = scalar_lea.vmem %s1562, 129
      %v1611 = vld [vmem:[%s1610] ss:$4 sm:$0xf]
      %s1612 = scalar_lea.vmem %s1562, 145
      %v1613 = vld [vmem:[%s1612] ss:$4 sm:$0xf]
      %s1614 = scalar_lea.vmem %s1562, 161
      %v1615 = vld [vmem:[%s1614] ss:$4 sm:$0xf]
      %s1616 = scalar_lea.vmem %s1562, 177
      %v1617 = vld [vmem:[%s1616] ss:$4 sm:$0xf]
      %s1618 = scalar_lea.vmem %s1562, 193
      %v1619 = vld [vmem:[%s1618] ss:$4 sm:$0xf]
      %s1620 = scalar_lea.vmem %s1562, 209
      %v1621 = vld [vmem:[%s1620] ss:$4 sm:$0xf]
      %s1622 = scalar_lea.vmem %s1562, 225
      %v1623 = vld [vmem:[%s1622] ss:$4 sm:$0xf]
      %s1624 = scalar_lea.vmem %s1562, 241
      %v1625 = vld [vmem:[%s1624] ss:$4 sm:$0xf]
      %s1626 = scalar_lea.vmem %s1562, 2
      %v1627 = vld [vmem:[%s1626] ss:$4 sm:$0xf]
      %s1628 = scalar_lea.vmem %s1562, 18
      %v1629 = vld [vmem:[%s1628] ss:$4 sm:$0xf]
      %s1630 = scalar_lea.vmem %s1562, 34
      %v1631 = vld [vmem:[%s1630] ss:$4 sm:$0xf]
      %s1632 = scalar_lea.vmem %s1562, 50
      %v1633 = vld [vmem:[%s1632] ss:$4 sm:$0xf]
      %s1634 = scalar_lea.vmem %s1562, 66
      %v1635 = vld [vmem:[%s1634] ss:$4 sm:$0xf]
      %s1636 = scalar_lea.vmem %s1562, 82
      %v1637 = vld [vmem:[%s1636] ss:$4 sm:$0xf]
      %s1638 = scalar_lea.vmem %s1562, 98
      %v1639 = vld [vmem:[%s1638] ss:$4 sm:$0xf]
      %s1640 = scalar_lea.vmem %s1562, 114
      %v1641 = vld [vmem:[%s1640] ss:$4 sm:$0xf]
      %s1642 = scalar_lea.vmem %s1562, 130
      %v1643 = vld [vmem:[%s1642] ss:$4 sm:$0xf]
      %s1644 = scalar_lea.vmem %s1562, 146
      %v1645 = vld [vmem:[%s1644] ss:$4 sm:$0xf]
      %s1646 = scalar_lea.vmem %s1562, 162
      %v1647 = vld [vmem:[%s1646] ss:$4 sm:$0xf]
      %s1648 = scalar_lea.vmem %s1562, 178
      %v1649 = vld [vmem:[%s1648] ss:$4 sm:$0xf]
      %s1650 = scalar_lea.vmem %s1562, 194
      %v1651 = vld [vmem:[%s1650] ss:$4 sm:$0xf]
      %s1652 = scalar_lea.vmem %s1562, 210
      %v1653 = vld [vmem:[%s1652] ss:$4 sm:$0xf]
      %s1654 = scalar_lea.vmem %s1562, 226
      %v1655 = vld [vmem:[%s1654] ss:$4 sm:$0xf]
      %s1656 = scalar_lea.vmem %s1562, 242
      %v1657 = vld [vmem:[%s1656] ss:$4 sm:$0xf]
      %1674 = vst [vmem:[#allocation1] ss:$9 sm:$0xff] %v1563
      %s1675 = scalar_lea.vmem [#allocation1], 1
      %1676 = vst [vmem:[%s1675] ss:$9 sm:$0xff] %v1565
      %s1677 = scalar_lea.vmem [#allocation1], 2
      %1678 = vst [vmem:[%s1677] ss:$9 sm:$0xff] %v1567
      %s1679 = scalar_lea.vmem [#allocation1], 3
      %1680 = vst [vmem:[%s1679] ss:$9 sm:$0xff] %v1569
      %s1681 = scalar_lea.vmem [#allocation1], 4
      %1682 = vst [vmem:[%s1681] ss:$9 sm:$0xff] %v1571
      %s1683 = scalar_lea.vmem [#allocation1], 5
      %1684 = vst [vmem:[%s1683] ss:$9 sm:$0xff] %v1573
      %s1685 = scalar_lea.vmem [#allocation1], 6
      %1686 = vst [vmem:[%s1685] ss:$9 sm:$0xff] %v1575
      %s1687 = scalar_lea.vmem [#allocation1], 7
      %1688 = vst [vmem:[%s1687] ss:$9 sm:$0xff] %v1577
      %v1689 = vld [vmem:[#allocation1] sm:$0xff]
      %v1690 = vld [vmem:[#allocation1 + $0x9] sm:$0xff]
      %v1691 = vld [vmem:[#allocation1 + $0x12] sm:$0xff]
      %v1692 = vld [vmem:[#allocation1 + $0x1b] sm:$0xff]
      %1693 = vst [vmem:[#allocation1] ss:$9 sm:$0xff] %v1579
      %1694 = vst [vmem:[%s1675] ss:$9 sm:$0xff] %v1581
      %1695 = vst [vmem:[%s1677] ss:$9 sm:$0xff] %v1583
      %1696 = vst [vmem:[%s1679] ss:$9 sm:$0xff] %v1585
      %1697 = vst [vmem:[%s1681] ss:$9 sm:$0xff] %v1587
      %1698 = vst [vmem:[%s1683] ss:$9 sm:$0xff] %v1589
      %1699 = vst [vmem:[%s1685] ss:$9 sm:$0xff] %v1591
      %1700 = vst [vmem:[%s1687] ss:$9 sm:$0xff] %v1593
      %v1701 = vld [vmem:[#allocation1] sm:$0xff]
      %v1702 = vld [vmem:[#allocation1 + $0x9] sm:$0xff]
      %v1703 = vld [vmem:[#allocation1 + $0x12] sm:$0xff]
      %v1704 = vld [vmem:[#allocation1 + $0x1b] sm:$0xff]
      %1713 = vmatpush.msra.mxu0 0.0
      %1714 = vmatpush.msra.mxu0 0.0
      %1715 = vmatpush.msra.mxu0 0.0
      %1716 = vmatpush.msra.mxu0 0.0
      %1717 = vmatpush.msra.mxu0 0.0
      %1718 = vmatpush.msra.mxu0 0.0
      %1719 = vmatpush.msra.mxu0 0.0
      %1720 = vmatpush.msra.mxu0 0.0
      %1721 = vmatpush.msra.mxu0 0.0
      %1722 = vmatpush.msra.mxu0 0.0
      %1723 = vmatpush.msra.mxu0 0.0
      %1724 = vmatpush.msra.mxu0 0.0
      %1725 = vmatpush.msra.mxu0 0.0
      %1726 = vmatpush.msra.mxu0 0.0
      %1727 = vmatpush.msra.mxu0 %v1701
      %1728 = vmatpush.msra.mxu0 %v1689
      %1729 = vmatmul.f32.gmra.mxu0 %v353
      %v1730 = vpop.f32.mrf.mxu0
      %v1731 = vadd.f32 0.0, %v1730
      %1732 = vmatmul.f32.gmra.mxu0 %v356
      %v1733 = vpop.f32.mrf.mxu0
      %v1734 = vadd.f32 0.0, %v1733
      %1735 = vdwg.mxu0
      %1736 = vmatpush.msra.mxu0 0.0
      %1737 = vmatpush.msra.mxu0 0.0
      %1738 = vmatpush.msra.mxu0 0.0
      %1739 = vmatpush.msra.mxu0 0.0
      %1740 = vmatpush.msra.mxu0 0.0
      %1741 = vmatpush.msra.mxu0 0.0
      %1742 = vmatpush.msra.mxu0 0.0
      %1743 = vmatpush.msra.mxu0 0.0
      %1744 = vmatpush.msra.mxu0 0.0
      %1745 = vmatpush.msra.mxu0 0.0
      %1746 = vmatpush.msra.mxu0 0.0
      %1747 = vmatpush.msra.mxu0 0.0
      %1748 = vmatpush.msra.mxu0 0.0
      %1749 = vmatpush.msra.mxu0 0.0
      %1750 = vmatpush.msra.mxu0 %v1702
      %1751 = vmatpush.msra.mxu0 %v1690
      %1752 = vmatmul.f32.gmra.mxu0 %v353
      %v1753 = vpop.f32.mrf.mxu0
      %v1754 = vadd.f32 0.0, %v1753
      %1755 = vmatmul.f32.gmra.mxu0 %v356
      %v1756 = vpop.f32.mrf.mxu0
      %v1757 = vadd.f32 0.0, %v1756
      %1758 = vdwg.mxu0
      %1759 = vmatpush.msra.mxu0 0.0
      %1760 = vmatpush.msra.mxu0 0.0
      %1761 = vmatpush.msra.mxu0 0.0
      %1762 = vmatpush.msra.mxu0 0.0
      %1763 = vmatpush.msra.mxu0 0.0
      %1764 = vmatpush.msra.mxu0 0.0
      %1765 = vmatpush.msra.mxu0 0.0
      %1766 = vmatpush.msra.mxu0 0.0
      %1767 = vmatpush.msra.mxu0 0.0
      %1768 = vmatpush.msra.mxu0 0.0
      %1769 = vmatpush.msra.mxu0 0.0
      %1770 = vmatpush.msra.mxu0 0.0
      %1771 = vmatpush.msra.mxu0 0.0
      %1772 = vmatpush.msra.mxu0 0.0
      %1773 = vmatpush.msra.mxu0 %v1703
      %1774 = vmatpush.msra.mxu0 %v1691
      %1775 = vmatmul.f32.gmra.mxu0 %v353
      %v1776 = vpop.f32.mrf.mxu0
      %v1777 = vadd.f32 0.0, %v1776
      %1778 = vmatmul.f32.gmra.mxu0 %v356
      %v1779 = vpop.f32.mrf.mxu0
      %v1780 = vadd.f32 0.0, %v1779
      %1781 = vdwg.mxu0
      %1782 = vmatpush.msra.mxu0 0.0
      %1783 = vmatpush.msra.mxu0 0.0
      %1784 = vmatpush.msra.mxu0 0.0
      %1785 = vmatpush.msra.mxu0 0.0
      %1786 = vmatpush.msra.mxu0 0.0
      %1787 = vmatpush.msra.mxu0 0.0
      %1788 = vmatpush.msra.mxu0 0.0
      %1789 = vmatpush.msra.mxu0 0.0
      %1790 = vmatpush.msra.mxu0 0.0
      %1791 = vmatpush.msra.mxu0 0.0
      %1792 = vmatpush.msra.mxu0 0.0
      %1793 = vmatpush.msra.mxu0 0.0
      %1794 = vmatpush.msra.mxu0 0.0
      %1795 = vmatpush.msra.mxu0 0.0
      %1796 = vmatpush.msra.mxu0 %v1704
      %1797 = vmatpush.msra.mxu0 %v1692
      %1798 = vmatmul.f32.gmra.mxu0 %v353
      %v1799 = vpop.f32.mrf.mxu0
      %v1800 = vadd.f32 0.0, %v1799
      %1801 = vmatmul.f32.gmra.mxu0 %v356
      %v1802 = vpop.f32.mrf.mxu0
      %v1803 = vadd.f32 0.0, %v1802
      %1804 = vdwg.mxu0
      %1821 = vst [vmem:[#allocation1] ss:$9 sm:$0xff] %v1595
      %s1822 = scalar_lea.vmem [#allocation1], 1
      %1823 = vst [vmem:[%s1822] ss:$9 sm:$0xff] %v1597
      %s1824 = scalar_lea.vmem [#allocation1], 2
      %1825 = vst [vmem:[%s1824] ss:$9 sm:$0xff] %v1599
      %s1826 = scalar_lea.vmem [#allocation1], 3
      %1827 = vst [vmem:[%s1826] ss:$9 sm:$0xff] %v1601
      %s1828 = scalar_lea.vmem [#allocation1], 4
      %1829 = vst [vmem:[%s1828] ss:$9 sm:$0xff] %v1603
      %s1830 = scalar_lea.vmem [#allocation1], 5
      %1831 = vst [vmem:[%s1830] ss:$9 sm:$0xff] %v1605
      %s1832 = scalar_lea.vmem [#allocation1], 6
      %1833 = vst [vmem:[%s1832] ss:$9 sm:$0xff] %v1607
      %s1834 = scalar_lea.vmem [#allocation1], 7
      %1835 = vst [vmem:[%s1834] ss:$9 sm:$0xff] %v1609
      %v1836 = vld [vmem:[#allocation1] sm:$0xff]
      %v1837 = vld [vmem:[#allocation1 + $0x9] sm:$0xff]
      %v1838 = vld [vmem:[#allocation1 + $0x12] sm:$0xff]
      %v1839 = vld [vmem:[#allocation1 + $0x1b] sm:$0xff]
      %1840 = vst [vmem:[#allocation1] ss:$9 sm:$0xff] %v1611
      %1841 = vst [vmem:[%s1822] ss:$9 sm:$0xff] %v1613
      %1842 = vst [vmem:[%s1824] ss:$9 sm:$0xff] %v1615
      %1843 = vst [vmem:[%s1826] ss:$9 sm:$0xff] %v1617
      %1844 = vst [vmem:[%s1828] ss:$9 sm:$0xff] %v1619
      %1845 = vst [vmem:[%s1830] ss:$9 sm:$0xff] %v1621
      %1846 = vst [vmem:[%s1832] ss:$9 sm:$0xff] %v1623
      %1847 = vst [vmem:[%s1834] ss:$9 sm:$0xff] %v1625
      %v1848 = vld [vmem:[#allocation1] sm:$0xff]
      %v1849 = vld [vmem:[#allocation1 + $0x9] sm:$0xff]
      %v1850 = vld [vmem:[#allocation1 + $0x12] sm:$0xff]
      %v1851 = vld [vmem:[#allocation1 + $0x1b] sm:$0xff]
      %1860 = vmatpush.msra.mxu0 0.0
      %1861 = vmatpush.msra.mxu0 0.0
      %1862 = vmatpush.msra.mxu0 0.0
      %1863 = vmatpush.msra.mxu0 0.0
      %1864 = vmatpush.msra.mxu0 0.0
      %1865 = vmatpush.msra.mxu0 0.0
      %1866 = vmatpush.msra.mxu0 0.0
      %1867 = vmatpush.msra.mxu0 0.0
      %1868 = vmatpush.msra.mxu0 0.0
      %1869 = vmatpush.msra.mxu0 0.0
      %1870 = vmatpush.msra.mxu0 0.0
      %1871 = vmatpush.msra.mxu0 0.0
      %1872 = vmatpush.msra.mxu0 0.0
      %1873 = vmatpush.msra.mxu0 0.0
      %1874 = vmatpush.msra.mxu0 %v1848
      %1875 = vmatpush.msra.mxu0 %v1836
      %1876 = vmatmul.f32.gmra.mxu0 %v353
      %v1877 = vpop.f32.mrf.mxu0
      %v1878 = vadd.f32 0.0, %v1877
      %1879 = vmatmul.f32.gmra.mxu0 %v356
      %v1880 = vpop.f32.mrf.mxu0
      %v1881 = vadd.f32 0.0, %v1880
      %1882 = vdwg.mxu0
      %1883 = vmatpush.msra.mxu0 0.0
      %1884 = vmatpush.msra.mxu0 0.0
      %1885 = vmatpush.msra.mxu0 0.0
      %1886 = vmatpush.msra.mxu0 0.0
      %1887 = vmatpush.msra.mxu0 0.0
      %1888 = vmatpush.msra.mxu0 0.0
      %1889 = vmatpush.msra.mxu0 0.0
      %1890 = vmatpush.msra.mxu0 0.0
      %1891 = vmatpush.msra.mxu0 0.0
      %1892 = vmatpush.msra.mxu0 0.0
      %1893 = vmatpush.msra.mxu0 0.0
      %1894 = vmatpush.msra.mxu0 0.0
      %1895 = vmatpush.msra.mxu0 0.0
      %1896 = vmatpush.msra.mxu0 0.0
      %1897 = vmatpush.msra.mxu0 %v1849
      %1898 = vmatpush.msra.mxu0 %v1837
      %1899 = vmatmul.f32.gmra.mxu0 %v353
      %v1900 = vpop.f32.mrf.mxu0
      %v1901 = vadd.f32 0.0, %v1900
      %1902 = vmatmul.f32.gmra.mxu0 %v356
      %v1903 = vpop.f32.mrf.mxu0
      %v1904 = vadd.f32 0.0, %v1903
      %1905 = vdwg.mxu0
      %1906 = vmatpush.msra.mxu0 0.0
      %1907 = vmatpush.msra.mxu0 0.0
      %1908 = vmatpush.msra.mxu0 0.0
      %1909 = vmatpush.msra.mxu0 0.0
      %1910 = vmatpush.msra.mxu0 0.0
      %1911 = vmatpush.msra.mxu0 0.0
      %1912 = vmatpush.msra.mxu0 0.0
      %1913 = vmatpush.msra.mxu0 0.0
      %1914 = vmatpush.msra.mxu0 0.0
      %1915 = vmatpush.msra.mxu0 0.0
      %1916 = vmatpush.msra.mxu0 0.0
      %1917 = vmatpush.msra.mxu0 0.0
      %1918 = vmatpush.msra.mxu0 0.0
      %1919 = vmatpush.msra.mxu0 0.0
      %1920 = vmatpush.msra.mxu0 %v1850
      %1921 = vmatpush.msra.mxu0 %v1838
      %1922 = vmatmul.f32.gmra.mxu0 %v353
      %v1923 = vpop.f32.mrf.mxu0
      %v1924 = vadd.f32 0.0, %v1923
      %1925 = vmatmul.f32.gmra.mxu0 %v356
      %v1926 = vpop.f32.mrf.mxu0
      %v1927 = vadd.f32 0.0, %v1926
      %1928 = vdwg.mxu0
      %1929 = vmatpush.msra.mxu0 0.0
      %1930 = vmatpush.msra.mxu0 0.0
      %1931 = vmatpush.msra.mxu0 0.0
      %1932 = vmatpush.msra.mxu0 0.0
      %1933 = vmatpush.msra.mxu0 0.0
      %1934 = vmatpush.msra.mxu0 0.0
      %1935 = vmatpush.msra.mxu0 0.0
      %1936 = vmatpush.msra.mxu0 0.0
      %1937 = vmatpush.msra.mxu0 0.0
      %1938 = vmatpush.msra.mxu0 0.0
      %1939 = vmatpush.msra.mxu0 0.0
      %1940 = vmatpush.msra.mxu0 0.0
      %1941 = vmatpush.msra.mxu0 0.0
      %1942 = vmatpush.msra.mxu0 0.0
      %1943 = vmatpush.msra.mxu0 %v1851
      %1944 = vmatpush.msra.mxu0 %v1839
      %1945 = vmatmul.f32.gmra.mxu0 %v353
      %v1946 = vpop.f32.mrf.mxu0
      %v1947 = vadd.f32 0.0, %v1946
      %1948 = vmatmul.f32.gmra.mxu0 %v356
      %v1949 = vpop.f32.mrf.mxu0
      %v1950 = vadd.f32 0.0, %v1949
      %1951 = vdwg.mxu0
      %1968 = vst [vmem:[#allocation1] ss:$9 sm:$0xff] %v1627
      %s1969 = scalar_lea.vmem [#allocation1], 1
      %1970 = vst [vmem:[%s1969] ss:$9 sm:$0xff] %v1629
      %s1971 = scalar_lea.vmem [#allocation1], 2
      %1972 = vst [vmem:[%s1971] ss:$9 sm:$0xff] %v1631
      %s1973 = scalar_lea.vmem [#allocation1], 3
      %1974 = vst [vmem:[%s1973] ss:$9 sm:$0xff] %v1633
      %s1975 = scalar_lea.vmem [#allocation1], 4
      %1976 = vst [vmem:[%s1975] ss:$9 sm:$0xff] %v1635
      %s1977 = scalar_lea.vmem [#allocation1], 5
      %1978 = vst [vmem:[%s1977] ss:$9 sm:$0xff] %v1637
      %s1979 = scalar_lea.vmem [#allocation1], 6
      %1980 = vst [vmem:[%s1979] ss:$9 sm:$0xff] %v1639
      %s1981 = scalar_lea.vmem [#allocation1], 7
      %1982 = vst [vmem:[%s1981] ss:$9 sm:$0xff] %v1641
      %v1983 = vld [vmem:[#allocation1] sm:$0xff]
      %v1984 = vld [vmem:[#allocation1 + $0x9] sm:$0xff]
      %v1985 = vld [vmem:[#allocation1 + $0x12] sm:$0xff]
      %v1986 = vld [vmem:[#allocation1 + $0x1b] sm:$0xff]
      %1987 = vst [vmem:[#allocation1] ss:$9 sm:$0xff] %v1643
      %1988 = vst [vmem:[%s1969] ss:$9 sm:$0xff] %v1645
      %1989 = vst [vmem:[%s1971] ss:$9 sm:$0xff] %v1647
      %1990 = vst [vmem:[%s1973] ss:$9 sm:$0xff] %v1649
      %1991 = vst [vmem:[%s1975] ss:$9 sm:$0xff] %v1651
      %1992 = vst [vmem:[%s1977] ss:$9 sm:$0xff] %v1653
      %1993 = vst [vmem:[%s1979] ss:$9 sm:$0xff] %v1655
      %1994 = vst [vmem:[%s1981] ss:$9 sm:$0xff] %v1657
      %v1995 = vld [vmem:[#allocation1] sm:$0xff]
      %v1996 = vld [vmem:[#allocation1 + $0x9] sm:$0xff]
      %v1997 = vld [vmem:[#allocation1 + $0x12] sm:$0xff]
      %v1998 = vld [vmem:[#allocation1 + $0x1b] sm:$0xff]
      %2007 = vmatpush.msra.mxu0 0.0
      %2008 = vmatpush.msra.mxu0 0.0
      %2009 = vmatpush.msra.mxu0 0.0
      %2010 = vmatpush.msra.mxu0 0.0
      %2011 = vmatpush.msra.mxu0 0.0
      %2012 = vmatpush.msra.mxu0 0.0
      %2013 = vmatpush.msra.mxu0 0.0
      %2014 = vmatpush.msra.mxu0 0.0
      %2015 = vmatpush.msra.mxu0 0.0
      %2016 = vmatpush.msra.mxu0 0.0
      %2017 = vmatpush.msra.mxu0 0.0
      %2018 = vmatpush.msra.mxu0 0.0
      %2019 = vmatpush.msra.mxu0 0.0
      %2020 = vmatpush.msra.mxu0 0.0
      %2021 = vmatpush.msra.mxu0 %v1995
      %2022 = vmatpush.msra.mxu0 %v1983
      %2023 = vmatmul.f32.gmra.mxu0 %v353
      %v2024 = vpop.f32.mrf.mxu0
      %v2025 = vadd.f32 0.0, %v2024
      %2026 = vmatmul.f32.gmra.mxu0 %v356
      %v2027 = vpop.f32.mrf.mxu0
      %v2028 = vadd.f32 0.0, %v2027
      %2029 = vdwg.mxu0
      %2030 = vmatpush.msra.mxu0 0.0
      %2031 = vmatpush.msra.mxu0 0.0
      %2032 = vmatpush.msra.mxu0 0.0
      %2033 = vmatpush.msra.mxu0 0.0
      %2034 = vmatpush.msra.mxu0 0.0
      %2035 = vmatpush.msra.mxu0 0.0
      %2036 = vmatpush.msra.mxu0 0.0
      %2037 = vmatpush.msra.mxu0 0.0
      %2038 = vmatpush.msra.mxu0 0.0
      %2039 = vmatpush.msra.mxu0 0.0
      %2040 = vmatpush.msra.mxu0 0.0
      %2041 = vmatpush.msra.mxu0 0.0
      %2042 = vmatpush.msra.mxu0 0.0
      %2043 = vmatpush.msra.mxu0 0.0
      %2044 = vmatpush.msra.mxu0 %v1996
      %2045 = vmatpush.msra.mxu0 %v1984
      %2046 = vmatmul.f32.gmra.mxu0 %v353
      %v2047 = vpop.f32.mrf.mxu0
      %v2048 = vadd.f32 0.0, %v2047
      %2049 = vmatmul.f32.gmra.mxu0 %v356
      %v2050 = vpop.f32.mrf.mxu0
      %v2051 = vadd.f32 0.0, %v2050
      %2052 = vdwg.mxu0
      %2053 = vmatpush.msra.mxu0 0.0
      %2054 = vmatpush.msra.mxu0 0.0
      %2055 = vmatpush.msra.mxu0 0.0
      %2056 = vmatpush.msra.mxu0 0.0
      %2057 = vmatpush.msra.mxu0 0.0
      %2058 = vmatpush.msra.mxu0 0.0
      %2059 = vmatpush.msra.mxu0 0.0
      %2060 = vmatpush.msra.mxu0 0.0
      %2061 = vmatpush.msra.mxu0 0.0
      %2062 = vmatpush.msra.mxu0 0.0
      %2063 = vmatpush.msra.mxu0 0.0
      %2064 = vmatpush.msra.mxu0 0.0
      %2065 = vmatpush.msra.mxu0 0.0
      %2066 = vmatpush.msra.mxu0 0.0
      %2067 = vmatpush.msra.mxu0 %v1997
      %2068 = vmatpush.msra.mxu0 %v1985
      %2069 = vmatmul.f32.gmra.mxu0 %v353
      %v2070 = vpop.f32.mrf.mxu0
      %v2071 = vadd.f32 0.0, %v2070
      %2072 = vmatmul.f32.gmra.mxu0 %v356
      %v2073 = vpop.f32.mrf.mxu0
      %v2074 = vadd.f32 0.0, %v2073
      %2075 = vdwg.mxu0
      %2076 = vmatpush.msra.mxu0 0.0
      %2077 = vmatpush.msra.mxu0 0.0
      %2078 = vmatpush.msra.mxu0 0.0
      %2079 = vmatpush.msra.mxu0 0.0
      %2080 = vmatpush.msra.mxu0 0.0
      %2081 = vmatpush.msra.mxu0 0.0
      %2082 = vmatpush.msra.mxu0 0.0
      %2083 = vmatpush.msra.mxu0 0.0
      %2084 = vmatpush.msra.mxu0 0.0
      %2085 = vmatpush.msra.mxu0 0.0
      %2086 = vmatpush.msra.mxu0 0.0
      %2087 = vmatpush.msra.mxu0 0.0
      %2088 = vmatpush.msra.mxu0 0.0
      %2089 = vmatpush.msra.mxu0 0.0
      %2090 = vmatpush.msra.mxu0 %v1998
      %2091 = vmatpush.msra.mxu0 %v1986
      %2092 = vmatmul.f32.gmra.mxu0 %v353
      %v2093 = vpop.f32.mrf.mxu0
      %v2094 = vadd.f32 0.0, %v2093
      %2095 = vmatmul.f32.gmra.mxu0 %v356
      %v2096 = vpop.f32.mrf.mxu0
      %v2097 = vadd.f32 0.0, %v2096
      %2098 = vdwg.mxu0
      %v2107 = vrot.slane %v1754, 7
      %v2108 = vrot.slane %v1777, 6
      %v2109 = vrot.slane %v1800, 5
      %v2110 = vrot.slane %v1757, 7
      %v2111 = vrot.slane %v1780, 6
      %v2112 = vrot.slane %v1803, 5
      %v2113 = vsel %vm758, %v1731, %v2107
      %v2114 = vsel %vm760, %v2108, %v2109
      %v2115 = vsel %vm762, %v2113, %v2114
      %v2116 = vsel %vm764, %v1731, %v2107
      %v2117 = vsel %vm766, %v2108, %v2109
      %v2118 = vsel %vm768, %v2116, %v2117
      %v2119 = vrot.slane %v2118, 1
      %v2120 = vsel %vm760, %v1731, %v2107
      %v2121 = vsel %vm772, %v2108, %v2109
      %v2122 = vsel %vm774, %v2120, %v2121
      %v2123 = vrot.slane %v2122, 2
      %v2124 = vsel %vm766, %v1731, %v2107
      %v2125 = vsel %vm778, %v2108, %v2109
      %v2126 = vsel %vm780, %v2124, %v2125
      %v2127 = vrot.slane %v2126, 3
      %v2128 = vsel %vm772, %v1731, %v2107
      %v2129 = vsel %vm784, %v2108, %v2109
      %v2130 = vsel %vm786, %v2128, %v2129
      %v2131 = vrot.slane %v2130, 4
      %v2132 = vsel %vm778, %v1731, %v2107
      %v2133 = vsel %vm790, %v2109, %v2108
      %v2134 = vsel %vm792, %v2132, %v2133
      %v2135 = vrot.slane %v2134, 5
      %v2136 = vsel %vm784, %v1731, %v2107
      %v2137 = vsel %vm758, %v2108, %v2109
      %v2138 = vsel %vm797, %v2137, %v2136
      %v2139 = vrot.slane %v2138, 6
      %v2140 = vsel %vm790, %v2107, %v1731
      %v2141 = vsel %vm764, %v2108, %v2109
      %v2142 = vsel %vm802, %v2141, %v2140
      %v2143 = vrot.slane %v2142, 7
      %v2144 = vsel %vm758, %v1734, %v2110
      %v2145 = vsel %vm760, %v2111, %v2112
      %v2146 = vsel %vm762, %v2144, %v2145
      %v2147 = vsel %vm764, %v1734, %v2110
      %v2148 = vsel %vm766, %v2111, %v2112
      %v2149 = vsel %vm768, %v2147, %v2148
      %v2150 = vrot.slane %v2149, 1
      %v2151 = vsel %vm760, %v1734, %v2110
      %v2152 = vsel %vm772, %v2111, %v2112
      %v2153 = vsel %vm774, %v2151, %v2152
      %v2154 = vrot.slane %v2153, 2
      %v2155 = vsel %vm766, %v1734, %v2110
      %v2156 = vsel %vm778, %v2111, %v2112
      %v2157 = vsel %vm780, %v2155, %v2156
      %v2158 = vrot.slane %v2157, 3
      %v2159 = vsel %vm772, %v1734, %v2110
      %v2160 = vsel %vm784, %v2111, %v2112
      %v2161 = vsel %vm786, %v2159, %v2160
      %v2162 = vrot.slane %v2161, 4
      %v2163 = vsel %vm778, %v1734, %v2110
      %v2164 = vsel %vm790, %v2112, %v2111
      %v2165 = vsel %vm792, %v2163, %v2164
      %v2166 = vrot.slane %v2165, 5
      %v2167 = vsel %vm784, %v1734, %v2110
      %v2168 = vsel %vm758, %v2111, %v2112
      %v2169 = vsel %vm797, %v2168, %v2167
      %v2170 = vrot.slane %v2169, 6
      %v2171 = vsel %vm790, %v2110, %v1734
      %v2172 = vsel %vm764, %v2111, %v2112
      %v2173 = vsel %vm802, %v2172, %v2171
      %v2174 = vrot.slane %v2173, 7
      %v2191 = vmul.f32 %v1563, %v2115
      %v2192 = vmul.f32 %v1565, %v2119
      %v2193 = vmul.f32 %v1567, %v2123
      %v2194 = vmul.f32 %v1569, %v2127
      %v2195 = vmul.f32 %v1571, %v2131
      %v2196 = vmul.f32 %v1573, %v2135
      %v2197 = vmul.f32 %v1575, %v2139
      %v2198 = vmul.f32 %v1577, %v2143
      %v2199 = vmul.f32 %v1579, %v2146
      %v2200 = vmul.f32 %v1581, %v2150
      %v2201 = vmul.f32 %v1583, %v2154
      %v2202 = vmul.f32 %v1585, %v2158
      %v2203 = vmul.f32 %v1587, %v2162
      %v2204 = vmul.f32 %v1589, %v2166
      %v2205 = vmul.f32 %v1591, %v2170
      %v2206 = vmul.f32 %v1593, %v2174
      %v2215 = vrot.slane %v1901, 7
      %v2216 = vrot.slane %v1924, 6
      %v2217 = vrot.slane %v1947, 5
      %v2218 = vrot.slane %v1904, 7
      %v2219 = vrot.slane %v1927, 6
      %v2220 = vrot.slane %v1950, 5
      %v2221 = vsel %vm758, %v1878, %v2215
      %v2222 = vsel %vm760, %v2216, %v2217
      %v2223 = vsel %vm762, %v2221, %v2222
      %v2224 = vsel %vm764, %v1878, %v2215
      %v2225 = vsel %vm766, %v2216, %v2217
      %v2226 = vsel %vm768, %v2224, %v2225
      %v2227 = vrot.slane %v2226, 1
      %v2228 = vsel %vm760, %v1878, %v2215
      %v2229 = vsel %vm772, %v2216, %v2217
      %v2230 = vsel %vm774, %v2228, %v2229
      %v2231 = vrot.slane %v2230, 2
      %v2232 = vsel %vm766, %v1878, %v2215
      %v2233 = vsel %vm778, %v2216, %v2217
      %v2234 = vsel %vm780, %v2232, %v2233
      %v2235 = vrot.slane %v2234, 3
      %v2236 = vsel %vm772, %v1878, %v2215
      %v2237 = vsel %vm784, %v2216, %v2217
      %v2238 = vsel %vm786, %v2236, %v2237
      %v2239 = vrot.slane %v2238, 4
      %v2240 = vsel %vm778, %v1878, %v2215
      %v2241 = vsel %vm790, %v2217, %v2216
      %v2242 = vsel %vm792, %v2240, %v2241
      %v2243 = vrot.slane %v2242, 5
      %v2244 = vsel %vm784, %v1878, %v2215
      %v2245 = vsel %vm758, %v2216, %v2217
      %v2246 = vsel %vm797, %v2245, %v2244
      %v2247 = vrot.slane %v2246, 6
      %v2248 = vsel %vm790, %v2215, %v1878
      %v2249 = vsel %vm764, %v2216, %v2217
      %v2250 = vsel %vm802, %v2249, %v2248
      %v2251 = vrot.slane %v2250, 7
      %v2252 = vsel %vm758, %v1881, %v2218
      %v2253 = vsel %vm760, %v2219, %v2220
      %v2254 = vsel %vm762, %v2252, %v2253
      %v2255 = vsel %vm764, %v1881, %v2218
      %v2256 = vsel %vm766, %v2219, %v2220
      %v2257 = vsel %vm768, %v2255, %v2256
      %v2258 = vrot.slane %v2257, 1
      %v2259 = vsel %vm760, %v1881, %v2218
      %v2260 = vsel %vm772, %v2219, %v2220
      %v2261 = vsel %vm774, %v2259, %v2260
      %v2262 = vrot.slane %v2261, 2
      %v2263 = vsel %vm766, %v1881, %v2218
      %v2264 = vsel %vm778, %v2219, %v2220
      %v2265 = vsel %vm780, %v2263, %v2264
      %v2266 = vrot.slane %v2265, 3
      %v2267 = vsel %vm772, %v1881, %v2218
      %v2268 = vsel %vm784, %v2219, %v2220
      %v2269 = vsel %vm786, %v2267, %v2268
      %v2270 = vrot.slane %v2269, 4
      %v2271 = vsel %vm778, %v1881, %v2218
      %v2272 = vsel %vm790, %v2220, %v2219
      %v2273 = vsel %vm792, %v2271, %v2272
      %v2274 = vrot.slane %v2273, 5
      %v2275 = vsel %vm784, %v1881, %v2218
      %v2276 = vsel %vm758, %v2219, %v2220
      %v2277 = vsel %vm797, %v2276, %v2275
      %v2278 = vrot.slane %v2277, 6
      %v2279 = vsel %vm790, %v2218, %v1881
      %v2280 = vsel %vm764, %v2219, %v2220
      %v2281 = vsel %vm802, %v2280, %v2279
      %v2282 = vrot.slane %v2281, 7
      %v2299 = vmul.f32 %v1595, %v2223
      %v2300 = vmul.f32 %v1597, %v2227
      %v2301 = vmul.f32 %v1599, %v2231
      %v2302 = vmul.f32 %v1601, %v2235
      %v2303 = vmul.f32 %v1603, %v2239
      %v2304 = vmul.f32 %v1605, %v2243
      %v2305 = vmul.f32 %v1607, %v2247
      %v2306 = vmul.f32 %v1609, %v2251
      %v2307 = vmul.f32 %v1611, %v2254
      %v2308 = vmul.f32 %v1613, %v2258
      %v2309 = vmul.f32 %v1615, %v2262
      %v2310 = vmul.f32 %v1617, %v2266
      %v2311 = vmul.f32 %v1619, %v2270
      %v2312 = vmul.f32 %v1621, %v2274
      %v2313 = vmul.f32 %v1623, %v2278
      %v2314 = vmul.f32 %v1625, %v2282
      %v2315 = vadd.f32 %v2191, %v2299
      %v2316 = vadd.f32 %v2192, %v2300
      %v2317 = vadd.f32 %v2193, %v2301
      %v2318 = vadd.f32 %v2194, %v2302
      %v2319 = vadd.f32 %v2195, %v2303
      %v2320 = vadd.f32 %v2196, %v2304
      %v2321 = vadd.f32 %v2197, %v2305
      %v2322 = vadd.f32 %v2198, %v2306
      %v2323 = vadd.f32 %v2199, %v2307
      %v2324 = vadd.f32 %v2200, %v2308
      %v2325 = vadd.f32 %v2201, %v2309
      %v2326 = vadd.f32 %v2202, %v2310
      %v2327 = vadd.f32 %v2203, %v2311
      %v2328 = vadd.f32 %v2204, %v2312
      %v2329 = vadd.f32 %v2205, %v2313
      %v2330 = vadd.f32 %v2206, %v2314
      %v2339 = vrot.slane %v2048, 7
      %v2340 = vrot.slane %v2071, 6
      %v2341 = vrot.slane %v2094, 5
      %v2342 = vrot.slane %v2051, 7
      %v2343 = vrot.slane %v2074, 6
      %v2344 = vrot.slane %v2097, 5
      %v2345 = vsel %vm758, %v2025, %v2339
      %v2346 = vsel %vm760, %v2340, %v2341
      %v2347 = vsel %vm762, %v2345, %v2346
      %v2348 = vsel %vm764, %v2025, %v2339
      %v2349 = vsel %vm766, %v2340, %v2341
      %v2350 = vsel %vm768, %v2348, %v2349
      %v2351 = vrot.slane %v2350, 1
      %v2352 = vsel %vm760, %v2025, %v2339
      %v2353 = vsel %vm772, %v2340, %v2341
      %v2354 = vsel %vm774, %v2352, %v2353
      %v2355 = vrot.slane %v2354, 2
      %v2356 = vsel %vm766, %v2025, %v2339
      %v2357 = vsel %vm778, %v2340, %v2341
      %v2358 = vsel %vm780, %v2356, %v2357
      %v2359 = vrot.slane %v2358, 3
      %v2360 = vsel %vm772, %v2025, %v2339
      %v2361 = vsel %vm784, %v2340, %v2341
      %v2362 = vsel %vm786, %v2360, %v2361
      %v2363 = vrot.slane %v2362, 4
      %v2364 = vsel %vm778, %v2025, %v2339
      %v2365 = vsel %vm790, %v2341, %v2340
      %v2366 = vsel %vm792, %v2364, %v2365
      %v2367 = vrot.slane %v2366, 5
      %v2368 = vsel %vm784, %v2025, %v2339
      %v2369 = vsel %vm758, %v2340, %v2341
      %v2370 = vsel %vm797, %v2369, %v2368
      %v2371 = vrot.slane %v2370, 6
      %v2372 = vsel %vm790, %v2339, %v2025
      %v2373 = vsel %vm764, %v2340, %v2341
      %v2374 = vsel %vm802, %v2373, %v2372
      %v2375 = vrot.slane %v2374, 7
      %v2376 = vsel %vm758, %v2028, %v2342
      %v2377 = vsel %vm760, %v2343, %v2344
      %v2378 = vsel %vm762, %v2376, %v2377
      %v2379 = vsel %vm764, %v2028, %v2342
      %v2380 = vsel %vm766, %v2343, %v2344
      %v2381 = vsel %vm768, %v2379, %v2380
      %v2382 = vrot.slane %v2381, 1
      %v2383 = vsel %vm760, %v2028, %v2342
      %v2384 = vsel %vm772, %v2343, %v2344
      %v2385 = vsel %vm774, %v2383, %v2384
      %v2386 = vrot.slane %v2385, 2
      %v2387 = vsel %vm766, %v2028, %v2342
      %v2388 = vsel %vm778, %v2343, %v2344
      %v2389 = vsel %vm780, %v2387, %v2388
      %v2390 = vrot.slane %v2389, 3
      %v2391 = vsel %vm772, %v2028, %v2342
      %v2392 = vsel %vm784, %v2343, %v2344
      %v2393 = vsel %vm786, %v2391, %v2392
      %v2394 = vrot.slane %v2393, 4
      %v2395 = vsel %vm778, %v2028, %v2342
      %v2396 = vsel %vm790, %v2344, %v2343
      %v2397 = vsel %vm792, %v2395, %v2396
      %v2398 = vrot.slane %v2397, 5
      %v2399 = vsel %vm784, %v2028, %v2342
      %v2400 = vsel %vm758, %v2343, %v2344
      %v2401 = vsel %vm797, %v2400, %v2399
      %v2402 = vrot.slane %v2401, 6
      %v2403 = vsel %vm790, %v2342, %v2028
      %v2404 = vsel %vm764, %v2343, %v2344
      %v2405 = vsel %vm802, %v2404, %v2403
      %v2406 = vrot.slane %v2405, 7
      %v2423 = vmul.f32 %v1627, %v2347
      %v2424 = vmul.f32 %v1629, %v2351
      %v2425 = vmul.f32 %v1631, %v2355
      %v2426 = vmul.f32 %v1633, %v2359
      %v2427 = vmul.f32 %v1635, %v2363
      %v2428 = vmul.f32 %v1637, %v2367
      %v2429 = vmul.f32 %v1639, %v2371
      %v2430 = vmul.f32 %v1641, %v2375
      %v2431 = vmul.f32 %v1643, %v2378
      %v2432 = vmul.f32 %v1645, %v2382
      %v2433 = vmul.f32 %v1647, %v2386
      %v2434 = vmul.f32 %v1649, %v2390
      %v2435 = vmul.f32 %v1651, %v2394
      %v2436 = vmul.f32 %v1653, %v2398
      %v2437 = vmul.f32 %v1655, %v2402
      %v2438 = vmul.f32 %v1657, %v2406
      %v2439 = vadd.f32 %v2315, %v2423
      %v2440 = vadd.f32 %v2316, %v2424
      %v2441 = vadd.f32 %v2317, %v2425
      %v2442 = vadd.f32 %v2318, %v2426
      %v2443 = vadd.f32 %v2319, %v2427
      %v2444 = vadd.f32 %v2320, %v2428
      %v2445 = vadd.f32 %v2321, %v2429
      %v2446 = vadd.f32 %v2322, %v2430
      %v2447 = vadd.f32 %v2323, %v2431
      %v2448 = vadd.f32 %v2324, %v2432
      %v2449 = vadd.f32 %v2325, %v2433
      %v2450 = vadd.f32 %v2326, %v2434
      %v2451 = vadd.f32 %v2327, %v2435
      %v2452 = vadd.f32 %v2328, %v2436
      %v2453 = vadd.f32 %v2329, %v2437
      %v2454 = vadd.f32 %v2330, %v2438
      %2471 = vst [vmem:[#allocation1] ss:$9 sm:$0xff] %v2439
      %s2472 = scalar_lea.vmem [#allocation1], 1
      %2473 = vst [vmem:[%s2472] ss:$9 sm:$0xff] %v2440
      %s2474 = scalar_lea.vmem [#allocation1], 2
      %2475 = vst [vmem:[%s2474] ss:$9 sm:$0xff] %v2441
      %s2476 = scalar_lea.vmem [#allocation1], 3
      %2477 = vst [vmem:[%s2476] ss:$9 sm:$0xff] %v2442
      %s2478 = scalar_lea.vmem [#allocation1], 4
      %2479 = vst [vmem:[%s2478] ss:$9 sm:$0xff] %v2443
      %s2480 = scalar_lea.vmem [#allocation1], 5
      %2481 = vst [vmem:[%s2480] ss:$9 sm:$0xff] %v2444
      %s2482 = scalar_lea.vmem [#allocation1], 6
      %2483 = vst [vmem:[%s2482] ss:$9 sm:$0xff] %v2445
      %s2484 = scalar_lea.vmem [#allocation1], 7
      %2485 = vst [vmem:[%s2484] ss:$9 sm:$0xff] %v2446
      %v2486 = vld [vmem:[#allocation1] sm:$0xff]
      %v2487 = vld [vmem:[#allocation1 + $0x9] sm:$0xff]
      %v2488 = vld [vmem:[#allocation1 + $0x12] sm:$0xff]
      %v2489 = vld [vmem:[#allocation1 + $0x1b] sm:$0xff]
      %2490 = vst [vmem:[#allocation1] ss:$9 sm:$0xff] %v2447
      %2491 = vst [vmem:[%s2472] ss:$9 sm:$0xff] %v2448
      %2492 = vst [vmem:[%s2474] ss:$9 sm:$0xff] %v2449
      %2493 = vst [vmem:[%s2476] ss:$9 sm:$0xff] %v2450
      %2494 = vst [vmem:[%s2478] ss:$9 sm:$0xff] %v2451
      %2495 = vst [vmem:[%s2480] ss:$9 sm:$0xff] %v2452
      %2496 = vst [vmem:[%s2482] ss:$9 sm:$0xff] %v2453
      %2497 = vst [vmem:[%s2484] ss:$9 sm:$0xff] %v2454
      %v2498 = vld [vmem:[#allocation1] sm:$0xff]
      %v2499 = vld [vmem:[#allocation1 + $0x9] sm:$0xff]
      %v2500 = vld [vmem:[#allocation1 + $0x12] sm:$0xff]
      %v2501 = vld [vmem:[#allocation1 + $0x1b] sm:$0xff]
      %v2510 = vmax.f32 %v2486, %v2488
      %v2511 = vmax.f32 %v2487, %v2489
      %v2512 = vmax.f32 %v2510, %v2511
      %2513 = vmax.xlane.f32.xlu0 %v2512
      %v2514 = vpop.xlane.xlu0 %2513
      %v2515 = vmax.f32 %v2498, %v2500
      %v2516 = vmax.f32 %v2499, %v2501
      %v2517 = vmax.f32 %v2515, %v2516
      %2518 = vmax.xlane.f32.xlu0 %v2517
      %v2519 = vpop.xlane.xlu0 %2518
      %v2522 = vperm.slane %v2514, 0
      %v2523 = vperm.slane %v2514, 1
      %v2524 = vperm.slane %v2514, 2
      %v2525 = vperm.slane %v2514, 3
      %v2526 = vperm.slane %v2514, 4
      %v2527 = vperm.slane %v2514, 5
      %v2528 = vperm.slane %v2514, 6
      %v2529 = vperm.slane %v2514, 7
      %v2530 = vperm.slane %v2519, 0
      %v2531 = vperm.slane %v2519, 1
      %v2532 = vperm.slane %v2519, 2
      %v2533 = vperm.slane %v2519, 3
      %v2534 = vperm.slane %v2519, 4
      %v2535 = vperm.slane %v2519, 5
      %v2536 = vperm.slane %v2519, 6
      %v2537 = vperm.slane %v2519, 7
      %vm2554 = vcmp.eq.f32.partialorder %v2439, %v2522
      %vm2555 = vcmp.eq.f32.partialorder %v2440, %v2523
      %vm2556 = vcmp.eq.f32.partialorder %v2441, %v2524
      %vm2557 = vcmp.eq.f32.partialorder %v2442, %v2525
      %vm2558 = vcmp.eq.f32.partialorder %v2443, %v2526
      %vm2559 = vcmp.eq.f32.partialorder %v2444, %v2527
      %vm2560 = vcmp.eq.f32.partialorder %v2445, %v2528
      %vm2561 = vcmp.eq.f32.partialorder %v2446, %v2529
      %vm2562 = vcmp.eq.f32.partialorder %v2447, %v2530
      %vm2563 = vcmp.eq.f32.partialorder %v2448, %v2531
      %vm2564 = vcmp.eq.f32.partialorder %v2449, %v2532
      %vm2565 = vcmp.eq.f32.partialorder %v2450, %v2533
      %vm2566 = vcmp.eq.f32.partialorder %v2451, %v2534
      %vm2567 = vcmp.eq.f32.partialorder %v2452, %v2535
      %vm2568 = vcmp.eq.f32.partialorder %v2453, %v2536
      %vm2569 = vcmp.eq.f32.partialorder %v2454, %v2537
      %v2570 = vsel %vm2554, %v1236, 512
      %v2571 = vsel %vm2555, %v1240, 512
      %v2572 = vsel %vm2556, %v1244, 512
      %v2573 = vsel %vm2557, %v1248, 512
      %v2574 = vsel %vm2558, %v1252, 512
      %v2575 = vsel %vm2559, %v1256, 512
      %v2576 = vsel %vm2560, %v1260, 512
      %v2577 = vsel %vm2561, %v1264, 512
      %v2578 = vsel %vm2562, %v1236, 512
      %v2579 = vsel %vm2563, %v1240, 512
      %v2580 = vsel %vm2564, %v1244, 512
      %v2581 = vsel %vm2565, %v1248, 512
      %v2582 = vsel %vm2566, %v1252, 512
      %v2583 = vsel %vm2567, %v1256, 512
      %v2584 = vsel %vm2568, %v1260, 512
      %v2585 = vsel %vm2569, %v1264, 512
      %2586 = vst [vmem:[#allocation1] ss:$9 sm:$0xff] %v2570
      %s2587 = scalar_lea.vmem [#allocation1], 1
      %2588 = vst [vmem:[%s2587] ss:$9 sm:$0xff] %v2571
      %s2589 = scalar_lea.vmem [#allocation1], 2
      %2590 = vst [vmem:[%s2589] ss:$9 sm:$0xff] %v2572
      %s2591 = scalar_lea.vmem [#allocation1], 3
      %2592 = vst [vmem:[%s2591] ss:$9 sm:$0xff] %v2573
      %s2593 = scalar_lea.vmem [#allocation1], 4
      %2594 = vst [vmem:[%s2593] ss:$9 sm:$0xff] %v2574
      %s2595 = scalar_lea.vmem [#allocation1], 5
      %2596 = vst [vmem:[%s2595] ss:$9 sm:$0xff] %v2575
      %s2597 = scalar_lea.vmem [#allocation1], 6
      %2598 = vst [vmem:[%s2597] ss:$9 sm:$0xff] %v2576
      %s2599 = scalar_lea.vmem [#allocation1], 7
      %2600 = vst [vmem:[%s2599] ss:$9 sm:$0xff] %v2577
      %v2601 = vld [vmem:[#allocation1] sm:$0xff]
      %v2602 = vld [vmem:[#allocation1 + $0x9] sm:$0xff]
      %v2603 = vld [vmem:[#allocation1 + $0x12] sm:$0xff]
      %v2604 = vld [vmem:[#allocation1 + $0x1b] sm:$0xff]
      %2605 = vst [vmem:[#allocation1] ss:$9 sm:$0xff] %v2578
      %2606 = vst [vmem:[%s2587] ss:$9 sm:$0xff] %v2579
      %2607 = vst [vmem:[%s2589] ss:$9 sm:$0xff] %v2580
      %2608 = vst [vmem:[%s2591] ss:$9 sm:$0xff] %v2581
      %2609 = vst [vmem:[%s2593] ss:$9 sm:$0xff] %v2582
      %2610 = vst [vmem:[%s2595] ss:$9 sm:$0xff] %v2583
      %2611 = vst [vmem:[%s2597] ss:$9 sm:$0xff] %v2584
      %2612 = vst [vmem:[%s2599] ss:$9 sm:$0xff] %v2585
      %v2613 = vld [vmem:[#allocation1] sm:$0xff]
      %v2614 = vld [vmem:[#allocation1 + $0x9] sm:$0xff]
      %v2615 = vld [vmem:[#allocation1 + $0x12] sm:$0xff]
      %v2616 = vld [vmem:[#allocation1 + $0x1b] sm:$0xff]
      %vm2617 = vcmp.lt.s32.totalorder %v2601, %v2603
      %v2618 = vsel %vm2617, %v2601, %v2603
      %vm2619 = vcmp.lt.s32.totalorder %v2602, %v2604
      %v2620 = vsel %vm2619, %v2602, %v2604
      %vm2621 = vcmp.lt.s32.totalorder %v2618, %v2620
      %v2622 = vsel %vm2621, %v2618, %v2620
      %v2623 = vand.u32 %v2622, 65535
      %v2624 = vshra.s32 %v2622, 16
      %v2625 = vcvt.s32.f32 %v2623
      %v2626 = vcvt.s32.f32 %v2624
      %2627 = vmin.xlane.f32.xlu0 %v2626
      %v2628 = vpop.xlane.xlu0 %2627
      %vm2629 = vcmp.eq.f32.partialorder %v2626, %v2628
      %v2630 = vsel %vm2629, %v2625, inf
      %2631 = vmin.xlane.f32.xlu0 %v2630
      %v2632 = vpop.xlane.xlu0 %2631
      %v2633 = vcvt.f32.s32 %v2632
      %v2634 = vcvt.f32.s32 %v2628
      %v2635 = vshll.u32 %v2634, 16
      %v2636 = vadd.s32 %v2635, %v2633
      %vm2637 = vcmp.lt.s32.totalorder %v2613, %v2615
      %v2638 = vsel %vm2637, %v2613, %v2615
      %vm2639 = vcmp.lt.s32.totalorder %v2614, %v2616
      %v2640 = vsel %vm2639, %v2614, %v2616
      %vm2641 = vcmp.lt.s32.totalorder %v2638, %v2640
      %v2642 = vsel %vm2641, %v2638, %v2640
      %v2643 = vand.u32 %v2642, 65535
      %v2644 = vshra.s32 %v2642, 16
      %v2645 = vcvt.s32.f32 %v2643
      %v2646 = vcvt.s32.f32 %v2644
      %2647 = vmin.xlane.f32.xlu0 %v2646
      %v2648 = vpop.xlane.xlu0 %2647
      %vm2649 = vcmp.eq.f32.partialorder %v2646, %v2648
      %v2650 = vsel %vm2649, %v2645, inf
      %2651 = vmin.xlane.f32.xlu0 %v2650
      %v2652 = vpop.xlane.xlu0 %2651
      %v2653 = vcvt.f32.s32 %v2652
      %v2654 = vcvt.f32.s32 %v2648
      %v2655 = vshll.u32 %v2654, 16
      %v2656 = vadd.s32 %v2655, %v2653
      %vm2657 = vcmp.eq.s32.totalorder %v197, %v2636
      %vm2658 = vcmp.eq.s32.totalorder %v198, %v2636
      %vm2659 = vcmp.eq.s32.totalorder %v199, %v2636
      %vm2660 = vcmp.eq.s32.totalorder %v200, %v2636
      %vm2661 = vcmp.eq.s32.totalorder %v197, %v2656
      %vm2662 = vcmp.eq.s32.totalorder %v198, %v2656
      %vm2663 = vcmp.eq.s32.totalorder %v199, %v2656
      %vm2664 = vcmp.eq.s32.totalorder %v200, %v2656
      %2665 = vst [vmem:[#allocation1] ss:$9 sm:$0xff] %v1563
      %s2666 = scalar_lea.vmem [#allocation1], 1
      %2667 = vst [vmem:[%s2666] ss:$9 sm:$0xff] %v1565
      %s2668 = scalar_lea.vmem [#allocation1], 2
      %2669 = vst [vmem:[%s2668] ss:$9 sm:$0xff] %v1567
      %s2670 = scalar_lea.vmem [#allocation1], 3
      %2671 = vst [vmem:[%s2670] ss:$9 sm:$0xff] %v1569
      %s2672 = scalar_lea.vmem [#allocation1], 4
      %2673 = vst [vmem:[%s2672] ss:$9 sm:$0xff] %v1571
      %s2674 = scalar_lea.vmem [#allocation1], 5
      %2675 = vst [vmem:[%s2674] ss:$9 sm:$0xff] %v1573
      %s2676 = scalar_lea.vmem [#allocation1], 6
      %2677 = vst [vmem:[%s2676] ss:$9 sm:$0xff] %v1575
      %s2678 = scalar_lea.vmem [#allocation1], 7
      %2679 = vst [vmem:[%s2678] ss:$9 sm:$0xff] %v1577
      %v2680 = vld [vmem:[#allocation1] sm:$0xff]
      %v2681 = vld [vmem:[#allocation1 + $0x9] sm:$0xff]
      %v2682 = vld [vmem:[#allocation1 + $0x12] sm:$0xff]
      %v2683 = vld [vmem:[#allocation1 + $0x1b] sm:$0xff]
      %2684 = vst [vmem:[#allocation1] ss:$9 sm:$0xff] %v1579
      %2685 = vst [vmem:[%s2666] ss:$9 sm:$0xff] %v1581
      %2686 = vst [vmem:[%s2668] ss:$9 sm:$0xff] %v1583
      %2687 = vst [vmem:[%s2670] ss:$9 sm:$0xff] %v1585
      %2688 = vst [vmem:[%s2672] ss:$9 sm:$0xff] %v1587
      %2689 = vst [vmem:[%s2674] ss:$9 sm:$0xff] %v1589
      %2690 = vst [vmem:[%s2676] ss:$9 sm:$0xff] %v1591
      %2691 = vst [vmem:[%s2678] ss:$9 sm:$0xff] %v1593
      %v2692 = vld [vmem:[#allocation1] sm:$0xff]
      %v2693 = vld [vmem:[#allocation1 + $0x9] sm:$0xff]
      %v2694 = vld [vmem:[#allocation1 + $0x12] sm:$0xff]
      %v2695 = vld [vmem:[#allocation1 + $0x1b] sm:$0xff]
      %v2704 = vsel %vm2657, %v2680, 0.0
      %v2705 = vsel %vm2658, %v2681, 0.0
      %v2706 = vsel %vm2659, %v2682, 0.0
      %v2707 = vsel %vm2660, %v2683, 0.0
      %v2708 = vsel %vm2661, %v2692, 0.0
      %v2709 = vsel %vm2662, %v2693, 0.0
      %v2710 = vsel %vm2663, %v2694, 0.0
      %v2711 = vsel %vm2664, %v2695, 0.0
      %v2712 = vadd.f32 %v2704, %v2705
      %v2713 = vadd.f32 %v2712, %v2706
      %v2714 = vadd.f32 %v2713, %v2707
      %2715 = vadd.xlane.f32.xlu0 %v2714
      %v2716 = vpop.xlane.xlu0 %2715
      %v2717 = vadd.f32 %v2708, %v2709
      %v2718 = vadd.f32 %v2717, %v2710
      %v2719 = vadd.f32 %v2718, %v2711
      %2720 = vadd.xlane.f32.xlu0 %v2719
      %v2721 = vpop.xlane.xlu0 %2720
      %2722 = vst [vmem:[#allocation1] ss:$9 sm:$0xff] %v1595
      %s2723 = scalar_lea.vmem [#allocation1], 1
      %2724 = vst [vmem:[%s2723] ss:$9 sm:$0xff] %v1597
      %s2725 = scalar_lea.vmem [#allocation1], 2
      %2726 = vst [vmem:[%s2725] ss:$9 sm:$0xff] %v1599
      %s2727 = scalar_lea.vmem [#allocation1], 3
      %2728 = vst [vmem:[%s2727] ss:$9 sm:$0xff] %v1601
      %s2729 = scalar_lea.vmem [#allocation1], 4
      %2730 = vst [vmem:[%s2729] ss:$9 sm:$0xff] %v1603
      %s2731 = scalar_lea.vmem [#allocation1], 5
      %2732 = vst [vmem:[%s2731] ss:$9 sm:$0xff] %v1605
      %s2733 = scalar_lea.vmem [#allocation1], 6
      %2734 = vst [vmem:[%s2733] ss:$9 sm:$0xff] %v1607
      %s2735 = scalar_lea.vmem [#allocation1], 7
      %2736 = vst [vmem:[%s2735] ss:$9 sm:$0xff] %v1609
      %v2737 = vld [vmem:[#allocation1] sm:$0xff]
      %v2738 = vld [vmem:[#allocation1 + $0x9] sm:$0xff]
      %v2739 = vld [vmem:[#allocation1 + $0x12] sm:$0xff]
      %v2740 = vld [vmem:[#allocation1 + $0x1b] sm:$0xff]
      %2741 = vst [vmem:[#allocation1] ss:$9 sm:$0xff] %v1611
      %2742 = vst [vmem:[%s2723] ss:$9 sm:$0xff] %v1613
      %2743 = vst [vmem:[%s2725] ss:$9 sm:$0xff] %v1615
      %2744 = vst [vmem:[%s2727] ss:$9 sm:$0xff] %v1617
      %2745 = vst [vmem:[%s2729] ss:$9 sm:$0xff] %v1619
      %2746 = vst [vmem:[%s2731] ss:$9 sm:$0xff] %v1621
      %2747 = vst [vmem:[%s2733] ss:$9 sm:$0xff] %v1623
      %2748 = vst [vmem:[%s2735] ss:$9 sm:$0xff] %v1625
      %v2749 = vld [vmem:[#allocation1] sm:$0xff]
      %v2750 = vld [vmem:[#allocation1 + $0x9] sm:$0xff]
      %v2751 = vld [vmem:[#allocation1 + $0x12] sm:$0xff]
      %v2752 = vld [vmem:[#allocation1 + $0x1b] sm:$0xff]
      %v2761 = vsel %vm2657, %v2737, 0.0
      %v2762 = vsel %vm2658, %v2738, 0.0
      %v2763 = vsel %vm2659, %v2739, 0.0
      %v2764 = vsel %vm2660, %v2740, 0.0
      %v2765 = vsel %vm2661, %v2749, 0.0
      %v2766 = vsel %vm2662, %v2750, 0.0
      %v2767 = vsel %vm2663, %v2751, 0.0
      %v2768 = vsel %vm2664, %v2752, 0.0
      %v2769 = vadd.f32 %v2761, %v2762
      %v2770 = vadd.f32 %v2769, %v2763
      %v2771 = vadd.f32 %v2770, %v2764
      %2772 = vadd.xlane.f32.xlu0 %v2771
      %v2773 = vpop.xlane.xlu0 %2772
      %v2774 = vadd.f32 %v2765, %v2766
      %v2775 = vadd.f32 %v2774, %v2767
      %v2776 = vadd.f32 %v2775, %v2768
      %2777 = vadd.xlane.f32.xlu0 %v2776
      %v2778 = vpop.xlane.xlu0 %2777
      %2779 = vst [vmem:[#allocation1] ss:$9 sm:$0xff] %v1627
      %s2780 = scalar_lea.vmem [#allocation1], 1
      %2781 = vst [vmem:[%s2780] ss:$9 sm:$0xff] %v1629
      %s2782 = scalar_lea.vmem [#allocation1], 2
      %2783 = vst [vmem:[%s2782] ss:$9 sm:$0xff] %v1631
      %s2784 = scalar_lea.vmem [#allocation1], 3
      %2785 = vst [vmem:[%s2784] ss:$9 sm:$0xff] %v1633
      %s2786 = scalar_lea.vmem [#allocation1], 4
      %2787 = vst [vmem:[%s2786] ss:$9 sm:$0xff] %v1635
      %s2788 = scalar_lea.vmem [#allocation1], 5
      %2789 = vst [vmem:[%s2788] ss:$9 sm:$0xff] %v1637
      %s2790 = scalar_lea.vmem [#allocation1], 6
      %2791 = vst [vmem:[%s2790] ss:$9 sm:$0xff] %v1639
      %s2792 = scalar_lea.vmem [#allocation1], 7
      %2793 = vst [vmem:[%s2792] ss:$9 sm:$0xff] %v1641
      %v2794 = vld [vmem:[#allocation1] sm:$0xff]
      %v2795 = vld [vmem:[#allocation1 + $0x9] sm:$0xff]
      %v2796 = vld [vmem:[#allocation1 + $0x12] sm:$0xff]
      %v2797 = vld [vmem:[#allocation1 + $0x1b] sm:$0xff]
      %2798 = vst [vmem:[#allocation1] ss:$9 sm:$0xff] %v1643
      %2799 = vst [vmem:[%s2780] ss:$9 sm:$0xff] %v1645
      %2800 = vst [vmem:[%s2782] ss:$9 sm:$0xff] %v1647
      %2801 = vst [vmem:[%s2784] ss:$9 sm:$0xff] %v1649
      %2802 = vst [vmem:[%s2786] ss:$9 sm:$0xff] %v1651
      %2803 = vst [vmem:[%s2788] ss:$9 sm:$0xff] %v1653
      %2804 = vst [vmem:[%s2790] ss:$9 sm:$0xff] %v1655
      %2805 = vst [vmem:[%s2792] ss:$9 sm:$0xff] %v1657
      %v2806 = vld [vmem:[#allocation1] sm:$0xff]
      %v2807 = vld [vmem:[#allocation1 + $0x9] sm:$0xff]
      %v2808 = vld [vmem:[#allocation1 + $0x12] sm:$0xff]
      %v2809 = vld [vmem:[#allocation1 + $0x1b] sm:$0xff]
      %v2818 = vsel %vm2657, %v2794, 0.0
      %v2819 = vsel %vm2658, %v2795, 0.0
      %v2820 = vsel %vm2659, %v2796, 0.0
      %v2821 = vsel %vm2660, %v2797, 0.0
      %v2822 = vsel %vm2661, %v2806, 0.0
      %v2823 = vsel %vm2662, %v2807, 0.0
      %v2824 = vsel %vm2663, %v2808, 0.0
      %v2825 = vsel %vm2664, %v2809, 0.0
      %v2826 = vadd.f32 %v2818, %v2819
      %v2827 = vadd.f32 %v2826, %v2820
      %v2828 = vadd.f32 %v2827, %v2821
      %2829 = vadd.xlane.f32.xlu0 %v2828
      %v2830 = vpop.xlane.xlu0 %2829
      %v2831 = vadd.f32 %v2822, %v2823
      %v2832 = vadd.f32 %v2831, %v2824
      %v2833 = vadd.f32 %v2832, %v2825
      %2834 = vadd.xlane.f32.xlu0 %v2833
      %v2835 = vpop.xlane.xlu0 %2834
      %v2836 = vsel %vm1531, %v2716, %v2773
      %v2837 = vsel %vm1531, %v2721, %v2778
      %v2838 = vsel %vm1534, %v2836, %v2830
      %v2839 = vsel %vm1534, %v2837, %v2835
      %s2840 = scalar_lea.vmem [#allocation2], 16
      %v2841 = vld [vmem:[%s2840] sm:$0xff]
      %v2842 = vld [vmem:[%s2840 + $0x8] sm:$0xff]
      %vm2843 = vcmp.gt.f32.partialorder %v2514, %v2841
      %vm2844 = vcmp.gt.f32.partialorder %v2519, %v2842
      %v2845 = vsel %vm2843, %v2514, %v2841
      %v2846 = vsel %vm2844, %v2519, %v2842
      %2847 = vst.msk [vmem:[%s2840] sm:$0xff] %vm1531, %v2845
      %2848 = vst.msk [vmem:[%s2840 + $0x8] sm:$0xff] %vm1531, %v2846
      %s2849 = scalar_lea.vmem [#allocation3], 16
      %v2850 = vld [vmem:[%s2849] sm:$0xff]
      %v2851 = vld [vmem:[%s2849 + $0x8] sm:$0xff]
      %v2852 = vsel %vm2843, 1, 0
      %v2853 = vsel %vm2844, 1, 0
      %2854 = vset.pattern.permute.xlu0 0
      %2855 = vperm.xlu0 %2854, %v2852
      %v2856 = vpop.permute.xlu0 %2855
      %2857 = vset.pattern.permute.xlu0 0
      %2858 = vperm.xlu0 %2857, %v2853
      %v2859 = vpop.permute.xlu0 %2858
      %vm2860 = vcmp.eq.s32.totalorder %v2856, 1
      %vm2861 = vcmp.eq.s32.totalorder %v2859, 1
      %v2862 = vsel %vm2860, %v2838, %v2850
      %v2863 = vsel %vm2861, %v2839, %v2851
      %2864 = vst.msk [vmem:[%s2849] sm:$0xff] %vm1559, %v2862
      %2865 = vst.msk [vmem:[%s2849 + $0x8] sm:$0xff] %vm1559, %v2863
      // Predicated region
      $region33: #{tpu_custom_call.1} parent=27 // pred_check
        %p2866 = pneg %p180
      $region34: #{tpu_custom_call.1} parent=27 // pred_check_branch
        %2868 = sbr.rel (%p2866) target = $region36
      $region35: #{tpu_custom_call.1} parent=27 // pred_region
        %v2869 = vld [vmem:[#allocation3] sm:$0xff]
        %v2870 = vld [vmem:[#allocation3 + $0x8] sm:$0xff]
        %v2871 = vld [vmem:[#allocation3 + $0x10] sm:$0xff]
        %v2872 = vld [vmem:[#allocation3 + $0x18] sm:$0xff]
        %2873 = vst.msk [vmem:[%s178] sm:$0xff] %vm1559, %v2869
        %2874 = vst.msk [vmem:[%s178 + $0x8] sm:$0xff] %vm1559, %v2870
        %2875 = vst.msk [vmem:[%s178 + $0x10] sm:$0xff] %vm1559, %v2871
        %2876 = vst.msk [vmem:[%s178 + $0x18] sm:$0xff] %vm1559, %v2872
      $region36: #{tpu_custom_call.1} parent=27 // pred_fallthru
        _
      %s2877 = smul.u32 2, %s17
      %p2878 = scmp.lt.s32.totalorder %s2877, 3
      %s2879 = scalar_select %p2878, %s2877, 3
      %s2880 = smul.addr %s2879, 2
      %s2881 = smul.addr %s2880, 8
      %s2882 = scalar_lea.vmem %s2, %s2881
      // Predicated region
      $region37: #{tpu_custom_call.1} parent=27 // pred_check
        %p2883 = pneg %p92
      $region38: #{tpu_custom_call.1} parent=27 // pred_check_branch
        %2885 = sbr.rel (%p2883) target = $region40
      $region39: #{tpu_custom_call.1} parent=27 // pred_region
        %s2886 = smul.u32 2, %s17
      $region40: #{tpu_custom_call.1} parent=27 // pred_fallthru
        _
    $region28: #{tpu_custom_call.1} parent=5 // pred_fallthru
      _
    %p2887 = scmp.le.s32.totalorder 2, %s8
    // Predicated region
    $region41: #{tpu_custom_call.1} parent=5 // pred_check
      %p2888 = pneg %p2887
    $region42: #{tpu_custom_call.1} parent=5 // pred_check_branch
      %2890 = sbr.rel (%p2888) target = $region44
    $region43: #{tpu_custom_call.1} parent=5 // pred_region
      %s2891 = ssub.s32 %s8, 2
      // Predicated region
      $region45: #{tpu_custom_call.1} parent=43 // pred_check
        %p2892 = pneg %p98
      $region46: #{tpu_custom_call.1} parent=43 // pred_check_branch
        %2894 = sbr.rel (%p2892) target = $region48
      $region47: #{tpu_custom_call.1} parent=43 // pred_region
        %s2895 = smul.u32 2, %s19
        %p2896 = scmp.lt.s32.totalorder %s2895, 3
        %s2897 = scalar_select %p2896, %s2895, 3
        %s2898 = smul.addr %s2897, 2
        %s2899 = smul.addr %s2898, 8
        %s2900 = scalar_lea.vmem %s2, %s2899
      $region48: #{tpu_custom_call.1} parent=43 // pred_fallthru
        _
    $region44: #{tpu_custom_call.1} parent=5 // pred_fallthru
      _
  $region6: #{tpu_custom_call.1} parent=0 // loop_footer
    %s12 = sadd.s32 1, %s8
  $region7: #{tpu_custom_call.1} parent=0 // loop_footer_branch
    %7 = sbr.rel target = $region3
  $region8: #{tpu_custom_call.1} parent=0 // loop_exit
    _

</llo_original>
